<compile_context>
chip_gen: v6e
topology: v6e:2x2x1
jax: 0.10.0
libtpu: 0.0.40
codegen_flags: <defaults>
</compile_context>

<pallas_src>
import math

import jax
import jax.numpy as jnp
from jax.experimental import pallas as pl
from jax.experimental.pallas import tpu as pltpu

GN_GROUPS = 32
GN_EPS = 1e-5


def _vmem_limit_bytes() -> int:
    """Per-generation scoped-VMEM budget (v5e/v6e: 128 MiB, v7x: 64 MiB)."""
    try:
        cap = int(pltpu.get_tpu_info().vmem_capacity_bytes)
    except Exception:  # no TPU info at trace time -> conservative default
        cap = 64 * 1024 * 1024
    return min(int(cap * 0.85), 112 * 1024 * 1024)


def _pick_tile(hw: int, target: int) -> int:
    """Largest lane-aligned token tile <= target that divides HW (falls back
    to the full extent, which is always a legal block)."""
    for cand in (2048, 1024, 512, 256, 128):
        if cand <= target and cand <= hw and hw % cand == 0:
            return cand
    return hw


# --------------------------------------------------------------------------
# Pass 1: per-channel sum / sum-of-squares over the HW token axis.
# --------------------------------------------------------------------------
def _gn_stats_kernel(x_ref, sum_ref, sq_ref):
    s = pl.program_id(1)

    @pl.when(s == 0)
    def _init():
        sum_ref[...] = jnp.zeros(sum_ref.shape, jnp.float32)
        sq_ref[...] = jnp.zeros(sq_ref.shape, jnp.float32)

    x = x_ref[0].astype(jnp.float32)                      # (C, ts)
    # Pure streaming reduction; this pass is HBM-bound so the lane reduce is
    # not on the critical path.
    sum_ref[0] += jnp.sum(x, axis=1, keepdims=True)       # (C, 1)
    sq_ref[0] += jnp.sum(x * x, axis=1, keepdims=True)    # (C, 1)


# --------------------------------------------------------------------------
# Pass 2: flash attention over spatial tokens (+ residual add).
# Grid = (batch, q-tile i, kv-tile j); full-sequence bf16 K/V cache in VMEM.
# --------------------------------------------------------------------------
def _flash_attn_kernel(xq_ref, xkv_ref, scale_ref, shift_ref,
                       wq_ref, bq_ref, wk_ref, bk_ref, wv_ref, bv_ref,
                       wo_ref, bo_ref, o_ref,
                       kcache, vcache, q_scr, m_scr, l_scr, acc_scr):
    i = pl.program_id(1)            # q-tile index
    j = pl.program_id(2)            # kv-tile index

    sc = scale_ref[0]               # (C, 1) fused GN scale (gamma * rsqrt(var+eps))
    sh = shift_ref[0]               # (C, 1) fused GN shift (beta - mean * scale)

    @pl.when(i == 0)
    def _fill_kv_cache():
        # Normalize + project this kv tile exactly once per batch and cache it
        # (bf16) for every q-tile.  Weights are (C_out, C_in): plain NN matmuls
        # with fp32 accumulation on the MXU.
        xkv = xkv_ref[0].astype(jnp.float32)                       # (C, tk)
        xnk = (xkv * sc + sh).astype(jnp.bfloat16)
        kT = jnp.dot(wk_ref[...], xnk,
                     preferred_element_type=jnp.float32) + bk_ref[...]
        vT = jnp.dot(wv_ref[...], xnk,
                     preferred_element_type=jnp.float32) + bv_ref[...]
        kcache[j] = kT.astype(jnp.bfloat16)                        # (C, tk)
        vcache[j] = vT.astype(jnp.bfloat16)

    @pl.when(j == 0)
    def _init_q_tile():
        m_scr[...] = jnp.full(m_scr.shape, -jnp.inf, jnp.float32)
        l_scr[...] = jnp.zeros(l_scr.shape, jnp.float32)
        acc_scr[...] = jnp.zeros(acc_scr.shape, jnp.float32)
        # Normalize + project the query tile once per q-tile; the 1/sqrt(C)
        # softmax scale is already folded into wq / bq.
        xq = xq_ref[0].astype(jnp.float32)                         # (C, tq)
        xnq = (xq * sc + sh).astype(jnp.bfloat16)
        qT = jnp.dot(wq_ref[...], xnq,
                     preferred_element_type=jnp.float32) + bq_ref[...]
        # One small, out-of-hot-loop transpose to token-major for the scores.
        q_scr[...] = jnp.transpose(qT).astype(jnp.bfloat16)        # (tq, C)

    kT = kcache[j]                                                 # (C, tk) bf16
    vT = vcache[j]                                                 # (C, tk) bf16

    # s = q @ k^T (channels contracted) -- plain NN matmul, fp32 accumulation.
    s = jnp.dot(q_scr[...], kT, preferred_element_type=jnp.float32)   # (tq, tk)

    # Online softmax update.
    m_prev = m_scr[...]                                            # (tq, 1)
    m_new = jnp.maximum(m_prev, jnp.max(s, axis=-1, keepdims=True))
    alpha = jnp.exp(m_prev - m_new)
    p = jnp.exp(s - m_new)                                         # (tq, tk)
    l_scr[...] = alpha * l_scr[...] + jnp.sum(p, axis=-1, keepdims=True)
    # acc += p @ v : contract the kv-token axis with the cached (C, tk) V tile.
    acc_scr[...] = alpha * acc_scr[...] + jax.lax.dot_general(
        p.astype(jnp.bfloat16), vT, (((1,), (1,)), ((), ())),
        preferred_element_type=jnp.float32)                        # (tq, C)
    m_scr[...] = m_new

    @pl.when(j == pl.num_programs(2) - 1)
    def _finalize():
        inv_l = pl.reciprocal(l_scr[...], approx=True)             # EUP, ~free
        attn = (acc_scr[...] * inv_l).astype(jnp.bfloat16)         # (tq, C)
        # out^T = Wo^T @ attn^T, expressed as an NT matmul so the result is
        # already channels-major, matching the (1, C, tq) output block.
        outT = jax.lax.dot_general(
            wo_ref[...], attn, (((1,), (1,)), ((), ())),
            preferred_element_type=jnp.float32) + bo_ref[...]      # (C, tq)
        # Residual add with the raw (pre-norm) q-tile.
        o_ref[0] = (outT + xq_ref[0].astype(jnp.float32)).astype(o_ref.dtype)


# --------------------------------------------------------------------------
# Wrapper
# --------------------------------------------------------------------------
def vae_attention_block(x_nchw, params, *, q_tile_target=256,
                        kv_tile_target=1024, stats_tile_target=2048):
    """x_nchw: (B, C, H, W) float32.  Returns (B, C, H, W)."""
    B, C, H, W = x_nchw.shape
    assert C % GN_GROUPS == 0, "GroupNorm(32, C) requires C % 32 == 0"
    HW = H * W
    tq = _pick_tile(HW, q_tile_target)
    tk = _pick_tile(HW, kv_tile_target)
    ts = _pick_tile(HW, stats_tile_target)
    n_q, n_kv, n_s = HW // tq, HW // tk, HW // ts

    vmem_limit = _vmem_limit_bytes()
    kv_cache_bytes = 2 * HW * C * 2        # bf16 K + V for the whole sequence
    # TODO(synk): HBM bf16 K/V precompute fallback for very large HW on v7x.
    assert kv_cache_bytes <= vmem_limit // 2, (
        f"full-sequence K/V VMEM cache ({kv_cache_bytes} B) does not fit")

    x_chw = x_nchw.reshape(B, C, HW)       # pure view: no HBM transpose

    # ---- Parameter prep (host side, tiny). -------------------------------
    inv_sqrt_c = 1.0 / math.sqrt(C)
    gamma = params["gamma"].reshape(1, C, 1).astype(jnp.float32)
    beta = params["beta"].reshape(1, C, 1).astype(jnp.float32)

    w_qkv, b_qkv = params["w_qkv"], params["b_qkv"]       # (C, 3C), (1, 3C)
    # Weights pre-transposed to (C_out, C_in): in-kernel projections become NN
    # matmuls on channels-major tiles.  1/sqrt(C) folded into the Q branch.
    wq_t = (w_qkv[:, 0 * C:1 * C] * inv_sqrt_c).T.astype(jnp.bfloat16)
    bq = (b_qkv[:, 0 * C:1 * C] * inv_sqrt_c).reshape(C, 1).astype(jnp.float32)
    wk_t = w_qkv[:, 1 * C:2 * C].T.astype(jnp.bfloat16)
    bk = b_qkv[:, 1 * C:2 * C].reshape(C, 1).astype(jnp.float32)
    wv_t = w_qkv[:, 2 * C:3 * C].T.astype(jnp.bfloat16)
    bv = b_qkv[:, 2 * C:3 * C].reshape(C, 1).astype(jnp.float32)
    wo_t = params["w_o"].T.astype(jnp.bfloat16)
    bo = params["b_o"].reshape(C, 1).astype(jnp.float32)

    # ---- Pass 1: stream x once, accumulate per-channel sum / sum-sq. -----
    sums, sqs = pl.pallas_call(
        _gn_stats_kernel,
        out_shape=(jax.ShapeDtypeStruct((B, C, 1), jnp.float32),
                   jax.ShapeDtypeStruct((B, C, 1), jnp.float32)),
        grid_spec=pltpu.PrefetchScalarGridSpec(
            num_scalar_prefetch=0,
            grid=(B, n_s),
            in_specs=[pl.BlockSpec((1, C, ts), lambda b, s: (b, 0, s))],
            out_specs=(pl.BlockSpec((1, C, 1), lambda b, s: (b, 0, 0)),
                       pl.BlockSpec((1, C, 1), lambda b, s: (b, 0, 0))),
        ),
        compiler_params=pltpu.CompilerParams(
            dimension_semantics=("parallel", "arbitrary"),
            vmem_limit_bytes=vmem_limit),
    )(x_chw)

    # Tiny per-group reduction -> fused per-channel GN scale / shift, done in
    # plain XLA on a (B, C) tensor (keeps iota/where constants and narrow
    # matmuls out of the kernel).  Biased variance, eps inside rsqrt (PyTorch).
    cs = C // GN_GROUPS
    denom = float(cs * HW)
    g_sum = sums.reshape(B, GN_GROUPS, cs).sum(axis=2, keepdims=True)
    g_sq = sqs.reshape(B, GN_GROUPS, cs).sum(axis=2, keepdims=True)
    mean_g = g_sum / denom
    var_g = g_sq / denom - mean_g * mean_g
    inv_g = jax.lax.rsqrt(var_g + GN_EPS)
    mean = jnp.broadcast_to(mean_g, (B, GN_GROUPS, cs)).reshape(B, C, 1)
    inv = jnp.broadcast_to(inv_g, (B, GN_GROUPS, cs)).reshape(B, C, 1)
    scale = gamma * inv                                   # (B, C, 1)
    shift = beta - mean * scale

    # ---- Pass 2: flash attention over the HW tokens + residual add. ------
    const_spec = lambda shape: pl.BlockSpec(
        shape, lambda b, i, j: (0, 0), pipeline_mode=pl.Buffered(1))

    def _xkv_index(b, i, j):
        # Only q-tile i == 0 consumes kv x-tiles (to fill the VMEM K/V cache);
        # collapsing to block 0 for i > 0 lets the pipeline skip the re-DMA,
        # so the kv x-stream costs ~1x|x| of HBM reads per batch.
        return (b, 0, jnp.where(i == 0, j, 0))

    out_chw = pl.pallas_call(
        _flash_attn_kernel,
        out_shape=jax.ShapeDtypeStruct((B, C, HW), x_nchw.dtype),
        grid_spec=pltpu.PrefetchScalarGridSpec(
            num_scalar_prefetch=0,
            grid=(B, n_q, n_kv),
            in_specs=[
                pl.BlockSpec((1, C, tq), lambda b, i, j: (b, 0, i)),  # x (q / residual)
                pl.BlockSpec((1, C, tk), _xkv_index),                 # x (kv rows)
                pl.BlockSpec((1, C, 1), lambda b, i, j: (b, 0, 0)),   # GN scale
                pl.BlockSpec((1, C, 1), lambda b, i, j: (b, 0, 0)),   # GN shift
                const_spec((C, C)), const_spec((C, 1)),               # wq_t, bq
                const_spec((C, C)), const_spec((C, 1)),               # wk_t, bk
                const_spec((C, C)), const_spec((C, 1)),               # wv_t, bv
                const_spec((C, C)), const_spec((C, 1)),               # wo_t, bo
            ],
            out_specs=pl.BlockSpec((1, C, tq), lambda b, i, j: (b, 0, i)),
            scratch_shapes=[
                pltpu.VMEM((n_kv, C, tk), jnp.bfloat16),   # K cache (full seq)
                pltpu.VMEM((n_kv, C, tk), jnp.bfloat16),   # V cache (full seq)
                pltpu.VMEM((tq, C), jnp.bfloat16),         # cached Q tile
                pltpu.VMEM((tq, 1), jnp.float32),          # running max  m
                pltpu.VMEM((tq, 1), jnp.float32),          # running sum  l
                pltpu.VMEM((tq, C), jnp.float32),          # output accumulator
            ],
        ),
        compiler_params=pltpu.CompilerParams(
            # The q-tile axis must stay sequential ("arbitrary") so every
            # q-tile on a core sees the K/V cache filled at i == 0; only the
            # batch axis is sharded across TensorCores (v7x megacore safe).
            dimension_semantics=("parallel", "arbitrary", "arbitrary"),
            vmem_limit_bytes=vmem_limit),
    )(x_chw, x_chw, scale, shift, wq_t, bq, wk_t, bk, wv_t, bv, wo_t, bo)

    return out_chw.reshape(B, C, H, W)


def make_params(key, channels):
    """Deterministic synthetic params mirroring GroupNorm + SelfAttention(1, C)."""
    k1, k2, k3, k4 = jax.random.split(key, 4)
    C = channels
    s = 0.05
    return {
        "gamma": 1.0 + s * jax.random.normal(k1, (1, C), jnp.float32),
        "beta": s * jax.random.normal(k2, (1, C), jnp.float32),
        # in_proj: Linear(C, 3C), stored transposed: y = x @ w_qkv + b_qkv
        "w_qkv": s * jax.random.normal(k3, (C, 3 * C), jnp.float32),
        "b_qkv": s * jax.random.normal(jax.random.fold_in(k3, 1),
                                       (1, 3 * C), jnp.float32),
        # out_proj: Linear(C, C), stored transposed as well.
        "w_o": s * jax.random.normal(k4, (C, C), jnp.float32),
        "b_o": s * jax.random.normal(jax.random.fold_in(k4, 1),
                                     (1, C), jnp.float32),
    }


def _reference(x_nchw, params):
    """Pure-JAX fp32 reference of the PyTorch forward for verification."""
    B, C, H, W = x_nchw.shape
    HW = H * W
    residue = x_nchw
    xg = x_nchw.reshape(B, GN_GROUPS, C // GN_GROUPS, H, W)
    mu = jnp.mean(xg, axis=(2, 3, 4), keepdims=True)
    var = jnp.mean((xg - mu) ** 2, axis=(2, 3, 4), keepdims=True)
    xn = ((xg - mu) / jnp.sqrt(var + GN_EPS)).reshape(B, C, H, W)
    xn = xn * params["gamma"].reshape(1, C, 1, 1) + params["beta"].reshape(1, C, 1, 1)
    t = jnp.transpose(xn.reshape(B, C, HW), (0, 2, 1))       # (B, HW, C)
    qkv = t @ params["w_qkv"] + params["b_qkv"]
    q, k, v = qkv[..., :C], qkv[..., C:2 * C], qkv[..., 2 * C:]
    s = (q @ jnp.swapaxes(k, -1, -2)) / math.sqrt(C)
    p = jax.nn.softmax(s, axis=-1)
    o = p @ v
    o = o @ params["w_o"] + params["b_o"]
    o = jnp.transpose(o, (0, 2, 1)).reshape(B, C, H, W)
    return o + residue


if __name__ == "__main__":
    B, C, H, W = 2, 64, 8, 8          # GroupNorm(32, C) requires C % 32 == 0
    key = jax.random.PRNGKey(0)
    kx, kp = jax.random.split(key)
    x = jax.random.normal(kx, (B, C, H, W), jnp.float32)
    params = make_params(kp, C)

    fwd = jax.jit(vae_attention_block)
    out = jax.block_until_ready(fwd(x, params))

    ref = _reference(x, params)
    assert out.shape == (B, C, H, W)
    err = float(jnp.max(jnp.abs(out - ref)))
    assert err < 2e-2, f"mismatch vs reference: max abs err = {err}"
    print("KERNEL_OK")
</pallas_src>

<mosaic_0001>
module attributes {stable_mosaic.version = 11 : i64} {
  func.func @_gn_stats_kernel(%arg0: i32, %arg1: i32, %arg2: memref<1x64x64xf32, #tpu.memory_space<vmem>>, %arg3: memref<1x64x1xf32, #tpu.memory_space<vmem>>, %arg4: memref<1x64x1xf32, #tpu.memory_space<vmem>>) attributes {dimension_semantics = [#tpu.dimension_semantics<parallel>, #tpu.dimension_semantics<arbitrary>], iteration_bounds = array<i64: 2, 1>, scalar_prefetch = 0 : i64, scratch_operands = 0 : i64, tpu.core_type = #tpu.core_type<tc>, window_params = [{transform_indices = @transform_0, window_bounds = array<i64: 1, 64, 64>}, {transform_indices = @transform_1, window_bounds = array<i64: 1, 64, 1>}, {transform_indices = @transform_2, window_bounds = array<i64: 1, 64, 1>}]} {
    %c0_i32 = arith.constant 0 : i32
    %0 = arith.cmpi eq, %arg1, %c0_i32 : i32
    %1 = arith.extui %0 : i1 to i32
    %c0_i32_0 = arith.constant 0 : i32
    %2 = arith.cmpi ne, %1, %c0_i32_0 : i32
    scf.if %2 {
      %cst_16 = arith.constant 0.000000e+00 : f32
      %22 = vector.broadcast %cst_16 : f32 to vector<1x64x1xf32>
      %c0_17 = arith.constant 0 : index
      %c0_18 = arith.constant 0 : index
      %c0_19 = arith.constant 0 : index
      %23 = vector.load %arg3[%c0_17, %c0_18, %c0_19] : memref<1x64x1xf32, #tpu.memory_space<vmem>>, vector<1x64x1xf32>
      tpu.vector_store %arg3[%c0_17, %c0_18, %c0_19], %22 {strides = array<i32>} : memref<1x64x1xf32, #tpu.memory_space<vmem>>, vector<1x64x1xf32>,
      %cst_20 = arith.constant 0.000000e+00 : f32
      %24 = vector.broadcast %cst_20 : f32 to vector<1x64x1xf32>
      %c0_21 = arith.constant 0 : index
      %c0_22 = arith.constant 0 : index
      %c0_23 = arith.constant 0 : index
      %25 = vector.load %arg4[%c0_21, %c0_22, %c0_23] : memref<1x64x1xf32, #tpu.memory_space<vmem>>, vector<1x64x1xf32>
      tpu.vector_store %arg4[%c0_21, %c0_22, %c0_23], %24 {strides = array<i32>} : memref<1x64x1xf32, #tpu.memory_space<vmem>>, vector<1x64x1xf32>,
    } else {
    }
    %c0 = arith.constant 0 : index
    %c0_1 = arith.constant 0 : index
    %c0_2 = arith.constant 0 : index
    %3 = vector.load %arg2[%c0, %c0_1, %c0_2] : memref<1x64x64xf32, #tpu.memory_space<vmem>>, vector<1x64x64xf32>
    %4 = vector.shape_cast %3 : vector<1x64x64xf32> to vector<64x64xf32>
    %c0_3 = arith.constant 0 : index
    %c0_4 = arith.constant 0 : index
    %c0_5 = arith.constant 0 : index
    %5 = vector.load %arg3[%c0_3, %c0_4, %c0_5] : memref<1x64x1xf32, #tpu.memory_space<vmem>>, vector<1x64x1xf32>
    %6 = vector.shape_cast %5 : vector<1x64x1xf32> to vector<64x1xf32>
    %cst = arith.constant dense<0.000000e+00> : vector<64xf32>
    %7 = vector.multi_reduction <add>, %4, %cst [1] : vector<64x64xf32> to vector<64xf32>
    %8 = vector.shape_cast %7 : vector<64xf32> to vector<64x1xf32>
    %9 = arith.addf %6, %8 : vector<64x1xf32>
    %c0_6 = arith.constant 0 : index
    %c0_7 = arith.constant 0 : index
    %c0_8 = arith.constant 0 : index
    %10 = vector.load %arg3[%c0_6, %c0_7, %c0_8] : memref<1x64x1xf32, #tpu.memory_space<vmem>>, vector<1x64x1xf32>
    %11 = vector.shape_cast %10 : vector<1x64x1xf32> to vector<64x1xf32>
    %12 = vector.shape_cast %9 : vector<64x1xf32> to vector<1x64x1xf32>
    tpu.vector_store %arg3[%c0_6, %c0_7, %c0_8], %12 {strides = array<i32>} : memref<1x64x1xf32, #tpu.memory_space<vmem>>, vector<1x64x1xf32>,
    %c0_9 = arith.constant 0 : index
    %c0_10 = arith.constant 0 : index
    %c0_11 = arith.constant 0 : index
    %13 = vector.load %arg4[%c0_9, %c0_10, %c0_11] : memref<1x64x1xf32, #tpu.memory_space<vmem>>, vector<1x64x1xf32>
    %14 = vector.shape_cast %13 : vector<1x64x1xf32> to vector<64x1xf32>
    %15 = arith.mulf %4, %4 : vector<64x64xf32>
    %cst_12 = arith.constant dense<0.000000e+00> : vector<64xf32>
    %16 = vector.multi_reduction <add>, %15, %cst_12 [1] : vector<64x64xf32> to vector<64xf32>
    %17 = vector.shape_cast %16 : vector<64xf32> to vector<64x1xf32>
    %18 = arith.addf %14, %17 : vector<64x1xf32>
    %c0_13 = arith.constant 0 : index
    %c0_14 = arith.constant 0 : index
    %c0_15 = arith.constant 0 : index
    %19 = vector.load %arg4[%c0_13, %c0_14, %c0_15] : memref<1x64x1xf32, #tpu.memory_space<vmem>>, vector<1x64x1xf32>
    %20 = vector.shape_cast %19 : vector<1x64x1xf32> to vector<64x1xf32>
    %21 = vector.shape_cast %18 : vector<64x1xf32> to vector<1x64x1xf32>
    tpu.vector_store %arg4[%c0_13, %c0_14, %c0_15], %21 {strides = array<i32>} : memref<1x64x1xf32, #tpu.memory_space<vmem>>, vector<1x64x1xf32>,
    return
  }
  func.func @transform_0(%arg0: i32, %arg1: i32) -> (i32, i32, i32) {
    %c0_i32 = arith.constant 0 : i32
    %c0_i32_0 = arith.constant 0 : i32
    return %arg0, %c0_i32, %arg1 : i32, i32, i32
  }
  func.func @transform_1(%arg0: i32, %arg1: i32) -> (i32, i32, i32) {
    %c0_i32 = arith.constant 0 : i32
    %c0_i32_0 = arith.constant 0 : i32
    %c0_i32_1 = arith.constant 0 : i32
    return %arg0, %c0_i32, %c0_i32_0 : i32, i32, i32
  }
  func.func @transform_2(%arg0: i32, %arg1: i32) -> (i32, i32, i32) {
    %c0_i32 = arith.constant 0 : i32
    %c0_i32_0 = arith.constant 0 : i32
    %c0_i32_1 = arith.constant 0 : i32
    return %arg0, %c0_i32, %c0_i32_0 : i32, i32, i32
  }
}

module attributes {stable_mosaic.version = 11 : i64} {
  func.func @_flash_attn_kernel(%arg0: i32, %arg1: i32, %arg2: i32, %arg3: memref<1x64x64xf32, #tpu.memory_space<vmem>>, %arg4: memref<1x64x64xf32, #tpu.memory_space<vmem>>, %arg5: memref<1x64x1xf32, #tpu.memory_space<vmem>>, %arg6: memref<1x64x1xf32, #tpu.memory_space<vmem>>, %arg7: memref<64x64xbf16, #tpu.memory_space<vmem>>, %arg8: memref<64x1xf32, #tpu.memory_space<vmem>>, %arg9: memref<64x64xbf16, #tpu.memory_space<vmem>>, %arg10: memref<64x1xf32, #tpu.memory_space<vmem>>, %arg11: memref<64x64xbf16, #tpu.memory_space<vmem>>, %arg12: memref<64x1xf32, #tpu.memory_space<vmem>>, %arg13: memref<64x64xbf16, #tpu.memory_space<vmem>>, %arg14: memref<64x1xf32, #tpu.memory_space<vmem>>, %arg15: memref<1x64x64xf32, #tpu.memory_space<vmem>>, %arg16: memref<1x64x64xbf16, #tpu.memory_space<vmem>>, %arg17: memref<1x64x64xbf16, #tpu.memory_space<vmem>>, %arg18: memref<64x64xbf16, #tpu.memory_space<vmem>>, %arg19: memref<64x1xf32, #tpu.memory_space<vmem>>, %arg20: memref<64x1xf32, #tpu.memory_space<vmem>>, %arg21: memref<64x64xf32, #tpu.memory_space<vmem>>) attributes {dimension_semantics = [#tpu.dimension_semantics<parallel>, #tpu.dimension_semantics<arbitrary>, #tpu.dimension_semantics<arbitrary>], iteration_bounds = array<i64: 2, 1, 1>, scalar_prefetch = 0 : i64, scratch_operands = 6 : i64, tpu.core_type = #tpu.core_type<tc>, window_params = [{transform_indices = @transform_0, window_bounds = array<i64: 1, 64, 64>}, {transform_indices = @transform_1, window_bounds = array<i64: 1, 64, 64>}, {transform_indices = @transform_2, window_bounds = array<i64: 1, 64, 1>}, {transform_indices = @transform_3, window_bounds = array<i64: 1, 64, 1>}, {pipeline_mode = #tpu.pipeline_mode<synchronous>, transform_indices = @transform_4, window_bounds = array<i64: 64, 64>}, {pipeline_mode = #tpu.pipeline_mode<synchronous>, transform_indices = @transform_5, window_bounds = array<i64: 64, 1>}, {pipeline_mode = #tpu.pipeline_mode<synchronous>, transform_indices = @transform_6, window_bounds = array<i64: 64, 64>}, {pipeline_mode = #tpu.pipeline_mode<synchronous>, transform_indices = @transform_7, window_bounds = array<i64: 64, 1>}, {pipeline_mode = #tpu.pipeline_mode<synchronous>, transform_indices = @transform_8, window_bounds = array<i64: 64, 64>}, {pipeline_mode = #tpu.pipeline_mode<synchronous>, transform_indices = @transform_9, window_bounds = array<i64: 64, 1>}, {pipeline_mode = #tpu.pipeline_mode<synchronous>, transform_indices = @transform_10, window_bounds = array<i64: 64, 64>}, {pipeline_mode = #tpu.pipeline_mode<synchronous>, transform_indices = @transform_11, window_bounds = array<i64: 64, 1>}, {transform_indices = @transform_12, window_bounds = array<i64: 1, 64, 64>}]} {
    %c0 = arith.constant 0 : index
    %c0_0 = arith.constant 0 : index
    %c0_1 = arith.constant 0 : index
    %0 = vector.load %arg5[%c0, %c0_0, %c0_1] : memref<1x64x1xf32, #tpu.memory_space<vmem>>, vector<1x64x1xf32>
    %1 = vector.shape_cast %0 : vector<1x64x1xf32> to vector<64x1xf32>
    %c0_2 = arith.constant 0 : index
    %c0_3 = arith.constant 0 : index
    %c0_4 = arith.constant 0 : index
    %2 = vector.load %arg6[%c0_2, %c0_3, %c0_4] : memref<1x64x1xf32, #tpu.memory_space<vmem>>, vector<1x64x1xf32>
    %3 = vector.shape_cast %2 : vector<1x64x1xf32> to vector<64x1xf32>
    %c0_i32 = arith.constant 0 : i32
    %4 = arith.cmpi eq, %arg1, %c0_i32 : i32
    %5 = arith.extui %4 : i1 to i32
    %c0_i32_5 = arith.constant 0 : i32
    %6 = arith.cmpi ne, %5, %c0_i32_5 : i32
    scf.if %6 {
      %c0_31 = arith.constant 0 : index
      %c0_32 = arith.constant 0 : index
      %c0_33 = arith.constant 0 : index
      %44 = vector.load %arg4[%c0_31, %c0_32, %c0_33] : memref<1x64x64xf32, #tpu.memory_space<vmem>>, vector<1x64x64xf32>
      %45 = vector.shape_cast %44 : vector<1x64x64xf32> to vector<64x64xf32>
      %46 = vector.broadcast %1 : vector<64x1xf32> to vector<64x64xf32>
      %47 = arith.mulf %45, %46 : vector<64x64xf32>
      %48 = vector.broadcast %3 : vector<64x1xf32> to vector<64x64xf32>
      %49 = arith.addf %47, %48 : vector<64x64xf32>
      %50 = arith.truncf %49 : vector<64x64xf32> to vector<64x64xbf16>
      %c0_34 = arith.constant 0 : index
      %c0_35 = arith.constant 0 : index
      %51 = vector.load %arg9[%c0_34, %c0_35] : memref<64x64xbf16, #tpu.memory_space<vmem>>, vector<64x64xbf16>
      %cst_36 = arith.constant dense<0.000000e+00> : vector<64x64xf32>
      %52 = tpu.matmul %51, %50, %cst_36 {dimension_numbers = #tpu.dot_dimension_numbers<[1], [0], [0], [1], [0, 0, 1, 1], [], []>} : vector<64x64xbf16>, vector<64x64xbf16>, vector<64x64xf32> -> vector<64x64xf32>
      %c0_37 = arith.constant 0 : index
      %c0_38 = arith.constant 0 : index
      %53 = vector.load %arg10[%c0_37, %c0_38] : memref<64x1xf32, #tpu.memory_space<vmem>>, vector<64x1xf32>
      %54 = vector.broadcast %53 : vector<64x1xf32> to vector<64x64xf32>
      %55 = arith.addf %52, %54 : vector<64x64xf32>
      %c0_39 = arith.constant 0 : index
      %c0_40 = arith.constant 0 : index
      %56 = vector.load %arg11[%c0_39, %c0_40] : memref<64x64xbf16, #tpu.memory_space<vmem>>, vector<64x64xbf16>
      %cst_41 = arith.constant dense<0.000000e+00> : vector<64x64xf32>
      %57 = tpu.matmul %56, %50, %cst_41 {dimension_numbers = #tpu.dot_dimension_numbers<[1], [0], [0], [1], [0, 0, 1, 1], [], []>} : vector<64x64xbf16>, vector<64x64xbf16>, vector<64x64xf32> -> vector<64x64xf32>
      %c0_42 = arith.constant 0 : index
      %c0_43 = arith.constant 0 : index
      %58 = vector.load %arg12[%c0_42, %c0_43] : memref<64x1xf32, #tpu.memory_space<vmem>>, vector<64x1xf32>
      %59 = vector.broadcast %58 : vector<64x1xf32> to vector<64x64xf32>
      %60 = arith.addf %57, %59 : vector<64x64xf32>
      %61 = arith.truncf %55 : vector<64x64xf32> to vector<64x64xbf16>
      %62 = arith.index_cast %arg2 : i32 to index
      %c0_44 = arith.constant 0 : index
      %c0_45 = arith.constant 0 : index
      %63 = vector.load %arg16[%62, %c0_44, %c0_45] : memref<1x64x64xbf16, #tpu.memory_space<vmem>>, vector<1x64x64xbf16>
      %64 = vector.shape_cast %63 : vector<1x64x64xbf16> to vector<64x64xbf16>
      %65 = vector.shape_cast %61 : vector<64x64xbf16> to vector<1x64x64xbf16>
      tpu.vector_store %arg16[%62, %c0_44, %c0_45], %65 {strides = array<i32>} : memref<1x64x64xbf16, #tpu.memory_space<vmem>>, vector<1x64x64xbf16>,
      %66 = arith.truncf %60 : vector<64x64xf32> to vector<64x64xbf16>
      %67 = arith.index_cast %arg2 : i32 to index
      %c0_46 = arith.constant 0 : index
      %c0_47 = arith.constant 0 : index
      %68 = vector.load %arg17[%67, %c0_46, %c0_47] : memref<1x64x64xbf16, #tpu.memory_space<vmem>>, vector<1x64x64xbf16>
      %69 = vector.shape_cast %68 : vector<1x64x64xbf16> to vector<64x64xbf16>
      %70 = vector.shape_cast %66 : vector<64x64xbf16> to vector<1x64x64xbf16>
      tpu.vector_store %arg17[%67, %c0_46, %c0_47], %70 {strides = array<i32>} : memref<1x64x64xbf16, #tpu.memory_space<vmem>>, vector<1x64x64xbf16>,
    } else {
    }
    %c0_i32_6 = arith.constant 0 : i32
    %7 = arith.cmpi eq, %arg2, %c0_i32_6 : i32
    %8 = arith.extui %7 : i1 to i32
    %c0_i32_7 = arith.constant 0 : i32
    %9 = arith.cmpi ne, %8, %c0_i32_7 : i32
    scf.if %9 {
      %cst_31 = arith.constant 0xFF800000 : f32
      %44 = vector.broadcast %cst_31 : f32 to vector<64x1xf32>
      %c0_32 = arith.constant 0 : index
      %c0_33 = arith.constant 0 : index
      %45 = vector.load %arg19[%c0_32, %c0_33] : memref<64x1xf32, #tpu.memory_space<vmem>>, vector<64x1xf32>
      tpu.vector_store %arg19[%c0_32, %c0_33], %44 {strides = array<i32>} : memref<64x1xf32, #tpu.memory_space<vmem>>, vector<64x1xf32>,
      %cst_34 = arith.constant 0.000000e+00 : f32
      %46 = vector.broadcast %cst_34 : f32 to vector<64x1xf32>
      %c0_35 = arith.constant 0 : index
      %c0_36 = arith.constant 0 : index
      %47 = vector.load %arg20[%c0_35, %c0_36] : memref<64x1xf32, #tpu.memory_space<vmem>>, vector<64x1xf32>
      tpu.vector_store %arg20[%c0_35, %c0_36], %46 {strides = array<i32>} : memref<64x1xf32, #tpu.memory_space<vmem>>, vector<64x1xf32>,
      %cst_37 = arith.constant 0.000000e+00 : f32
      %48 = vector.broadcast %cst_37 : f32 to vector<64x64xf32>
      %c0_38 = arith.constant 0 : index
      %c0_39 = arith.constant 0 : index
      %49 = vector.load %arg21[%c0_38, %c0_39] : memref<64x64xf32, #tpu.memory_space<vmem>>, vector<64x64xf32>
      tpu.vector_store %arg21[%c0_38, %c0_39], %48 {strides = array<i32>} : memref<64x64xf32, #tpu.memory_space<vmem>>, vector<64x64xf32>,
      %c0_40 = arith.constant 0 : index
      %c0_41 = arith.constant 0 : index
      %c0_42 = arith.constant 0 : index
      %50 = vector.load %arg3[%c0_40, %c0_41, %c0_42] : memref<1x64x64xf32, #tpu.memory_space<vmem>>, vector<1x64x64xf32>
      %51 = vector.shape_cast %50 : vector<1x64x64xf32> to vector<64x64xf32>
      %52 = vector.broadcast %1 : vector<64x1xf32> to vector<64x64xf32>
      %53 = arith.mulf %51, %52 : vector<64x64xf32>
      %54 = vector.broadcast %3 : vector<64x1xf32> to vector<64x64xf32>
      %55 = arith.addf %53, %54 : vector<64x64xf32>
      %56 = arith.truncf %55 : vector<64x64xf32> to vector<64x64xbf16>
      %c0_43 = arith.constant 0 : index
      %c0_44 = arith.constant 0 : index
      %57 = vector.load %arg7[%c0_43, %c0_44] : memref<64x64xbf16, #tpu.memory_space<vmem>>, vector<64x64xbf16>
      %cst_45 = arith.constant dense<0.000000e+00> : vector<64x64xf32>
      %58 = tpu.matmul %57, %56, %cst_45 {dimension_numbers = #tpu.dot_dimension_numbers<[1], [0], [0], [1], [0, 0, 1, 1], [], []>} : vector<64x64xbf16>, vector<64x64xbf16>, vector<64x64xf32> -> vector<64x64xf32>
      %c0_46 = arith.constant 0 : index
      %c0_47 = arith.constant 0 : index
      %59 = vector.load %arg8[%c0_46, %c0_47] : memref<64x1xf32, #tpu.memory_space<vmem>>, vector<64x1xf32>
      %60 = vector.broadcast %59 : vector<64x1xf32> to vector<64x64xf32>
      %61 = arith.addf %58, %60 : vector<64x64xf32>
      %62 = tpu.transpose %61, [1, 0] : vector<64x64xf32> -> vector<64x64xf32>
      %63 = arith.truncf %62 : vector<64x64xf32> to vector<64x64xbf16>
      %c0_48 = arith.constant 0 : index
      %c0_49 = arith.constant 0 : index
      %64 = vector.load %arg18[%c0_48, %c0_49] : memref<64x64xbf16, #tpu.memory_space<vmem>>, vector<64x64xbf16>
      tpu.vector_store %arg18[%c0_48, %c0_49], %63 {strides = array<i32>} : memref<64x64xbf16, #tpu.memory_space<vmem>>, vector<64x64xbf16>,
    } else {
    }
    %10 = arith.index_cast %arg2 : i32 to index
    %c0_8 = arith.constant 0 : index
    %c0_9 = arith.constant 0 : index
    %11 = vector.load %arg16[%10, %c0_8, %c0_9] : memref<1x64x64xbf16, #tpu.memory_space<vmem>>, vector<1x64x64xbf16>
    %12 = vector.shape_cast %11 : vector<1x64x64xbf16> to vector<64x64xbf16>
    %13 = arith.index_cast %arg2 : i32 to index
    %c0_10 = arith.constant 0 : index
    %c0_11 = arith.constant 0 : index
    %14 = vector.load %arg17[%13, %c0_10, %c0_11] : memref<1x64x64xbf16, #tpu.memory_space<vmem>>, vector<1x64x64xbf16>
    %15 = vector.shape_cast %14 : vector<1x64x64xbf16> to vector<64x64xbf16>
    %c0_12 = arith.constant 0 : index
    %c0_13 = arith.constant 0 : index
    %16 = vector.load %arg18[%c0_12, %c0_13] : memref<64x64xbf16, #tpu.memory_space<vmem>>, vector<64x64xbf16>
    %cst = arith.constant dense<0.000000e+00> : vector<64x64xf32>
    %17 = tpu.matmul %16, %12, %cst {dimension_numbers = #tpu.dot_dimension_numbers<[1], [0], [0], [1], [0, 0, 1, 1], [], []>} : vector<64x64xbf16>, vector<64x64xbf16>, vector<64x64xf32> -> vector<64x64xf32>
    %c0_14 = arith.constant 0 : index
    %c0_15 = arith.constant 0 : index
    %18 = vector.load %arg19[%c0_14, %c0_15] : memref<64x1xf32, #tpu.memory_space<vmem>>, vector<64x1xf32>
    %cst_16 = arith.constant dense<0xFF800000> : vector<64xf32>
    %19 = vector.multi_reduction <maximumf>, %17, %cst_16 [1] : vector<64x64xf32> to vector<64xf32>
    %20 = vector.shape_cast %19 : vector<64xf32> to vector<64x1xf32>
    %21 = arith.maximumf %18, %20 : vector<64x1xf32>
    %22 = arith.subf %18, %21 : vector<64x1xf32>
    %23 = math.exp %22 : vector<64x1xf32>
    %24 = vector.broadcast %21 : vector<64x1xf32> to vector<64x64xf32>
    %25 = arith.subf %17, %24 : vector<64x64xf32>
    %26 = math.exp %25 : vector<64x64xf32>
    %c0_17 = arith.constant 0 : index
    %c0_18 = arith.constant 0 : index
    %27 = vector.load %arg20[%c0_17, %c0_18] : memref<64x1xf32, #tpu.memory_space<vmem>>, vector<64x1xf32>
    %28 = arith.mulf %23, %27 : vector<64x1xf32>
    %cst_19 = arith.constant dense<0.000000e+00> : vector<64xf32>
    %29 = vector.multi_reduction <add>, %26, %cst_19 [1] : vector<64x64xf32> to vector<64xf32>
    %30 = vector.shape_cast %29 : vector<64xf32> to vector<64x1xf32>
    %31 = arith.addf %28, %30 : vector<64x1xf32>
    %c0_20 = arith.constant 0 : index
    %c0_21 = arith.constant 0 : index
    %32 = vector.load %arg20[%c0_20, %c0_21] : memref<64x1xf32, #tpu.memory_space<vmem>>, vector<64x1xf32>
    tpu.vector_store %arg20[%c0_20, %c0_21], %31 {strides = array<i32>} : memref<64x1xf32, #tpu.memory_space<vmem>>, vector<64x1xf32>,
    %c0_22 = arith.constant 0 : index
    %c0_23 = arith.constant 0 : index
    %33 = vector.load %arg21[%c0_22, %c0_23] : memref<64x64xf32, #tpu.memory_space<vmem>>, vector<64x64xf32>
    %34 = vector.broadcast %23 : vector<64x1xf32> to vector<64x64xf32>
    %35 = arith.mulf %34, %33 : vector<64x64xf32>
    %36 = arith.truncf %26 : vector<64x64xf32> to vector<64x64xbf16>
    %cst_24 = arith.constant dense<0.000000e+00> : vector<64x64xf32>
    %37 = tpu.matmul %36, %15, %cst_24 {dimension_numbers = #tpu.dot_dimension_numbers<[1], [1], [0], [0], [0, 0, 1, 0], [], []>} : vector<64x64xbf16>, vector<64x64xbf16>, vector<64x64xf32> -> vector<64x64xf32>
    %38 = arith.addf %35, %37 : vector<64x64xf32>
    %c0_25 = arith.constant 0 : index
    %c0_26 = arith.constant 0 : index
    %39 = vector.load %arg21[%c0_25, %c0_26] : memref<64x64xf32, #tpu.memory_space<vmem>>, vector<64x64xf32>
    tpu.vector_store %arg21[%c0_25, %c0_26], %38 {strides = array<i32>} : memref<64x64xf32, #tpu.memory_space<vmem>>, vector<64x64xf32>,
    %c0_27 = arith.constant 0 : index
    %c0_28 = arith.constant 0 : index
    %40 = vector.load %arg19[%c0_27, %c0_28] : memref<64x1xf32, #tpu.memory_space<vmem>>, vector<64x1xf32>
    tpu.vector_store %arg19[%c0_27, %c0_28], %21 {strides = array<i32>} : memref<64x1xf32, #tpu.memory_space<vmem>>, vector<64x1xf32>,
    %c0_i32_29 = arith.constant 0 : i32
    %41 = arith.cmpi eq, %arg2, %c0_i32_29 : i32
    %42 = arith.extui %41 : i1 to i32
    %c0_i32_30 = arith.constant 0 : i32
    %43 = arith.cmpi ne, %42, %c0_i32_30 : i32
    scf.if %43 {
      %c0_31 = arith.constant 0 : index
      %c0_32 = arith.constant 0 : index
      %44 = vector.load %arg20[%c0_31, %c0_32] : memref<64x1xf32, #tpu.memory_space<vmem>>, vector<64x1xf32>
      %45 = tpu.reciprocal %44 {approx = true} : vector<64x1xf32> -> vector<64x1xf32>
      %c0_33 = arith.constant 0 : index
      %c0_34 = arith.constant 0 : index
      %46 = vector.load %arg21[%c0_33, %c0_34] : memref<64x64xf32, #tpu.memory_space<vmem>>, vector<64x64xf32>
      %47 = vector.broadcast %45 : vector<64x1xf32> to vector<64x64xf32>
      %48 = arith.mulf %46, %47 : vector<64x64xf32>
      %49 = arith.truncf %48 : vector<64x64xf32> to vector<64x64xbf16>
      %c0_35 = arith.constant 0 : index
      %c0_36 = arith.constant 0 : index
      %50 = vector.load %arg13[%c0_35, %c0_36] : memref<64x64xbf16, #tpu.memory_space<vmem>>, vector<64x64xbf16>
      %cst_37 = arith.constant dense<0.000000e+00> : vector<64x64xf32>
      %51 = tpu.matmul %50, %49, %cst_37 {dimension_numbers = #tpu.dot_dimension_numbers<[1], [1], [0], [0], [0, 0, 1, 0], [], []>} : vector<64x64xbf16>, vector<64x64xbf16>, vector<64x64xf32> -> vector<64x64xf32>
      %c0_38 = arith.constant 0 : index
      %c0_39 = arith.constant 0 : index
      %52 = vector.load %arg14[%c0_38, %c0_39] : memref<64x1xf32, #tpu.memory_space<vmem>>, vector<64x1xf32>
      %53 = vector.broadcast %52 : vector<64x1xf32> to vector<64x64xf32>
      %54 = arith.addf %51, %53 : vector<64x64xf32>
      %c0_40 = arith.constant 0 : index
      %c0_41 = arith.constant 0 : index
      %c0_42 = arith.constant 0 : index
      %55 = vector.load %arg3[%c0_40, %c0_41, %c0_42] : memref<1x64x64xf32, #tpu.memory_space<vmem>>, vector<1x64x64xf32>
      %56 = vector.shape_cast %55 : vector<1x64x64xf32> to vector<64x64xf32>
      %57 = arith.addf %54, %56 : vector<64x64xf32>
      %c0_43 = arith.constant 0 : index
      %c0_44 = arith.constant 0 : index
      %c0_45 = arith.constant 0 : index
      %58 = vector.load %arg15[%c0_43, %c0_44, %c0_45] : memref<1x64x64xf32, #tpu.memory_space<vmem>>, vector<1x64x64xf32>
      %59 = vector.shape_cast %58 : vector<1x64x64xf32> to vector<64x64xf32>
      %60 = vector.shape_cast %57 : vector<64x64xf32> to vector<1x64x64xf32>
      tpu.vector_store %arg15[%c0_43, %c0_44, %c0_45], %60 {strides = array<i32>} : memref<1x64x64xf32, #tpu.memory_space<vmem>>, vector<1x64x64xf32>,
    } else {
    }
    return
  }
  func.func @transform_0(%arg0: i32, %arg1: i32, %arg2: i32) -> (i32, i32, i32) {
    %c0_i32 = arith.constant 0 : i32
    %c0_i32_0 = arith.constant 0 : i32
    return %arg0, %c0_i32, %arg1 : i32, i32, i32
  }
  func.func @transform_1(%arg0: i32, %arg1: i32, %arg2: i32) -> (i32, i32, i32) {
    %c0_i32 = arith.constant 0 : i32
    %0 = arith.cmpi eq, %arg1, %c0_i32 : i32
    %c0_i32_0 = arith.constant 0 : i32
    %1 = arith.select %0, %arg2, %c0_i32_0 : i32
    %c0_i32_1 = arith.constant 0 : i32
    %c0_i32_2 = arith.constant 0 : i32
    return %arg0, %c0_i32_1, %1 : i32, i32, i32
  }
  func.func @transform_2(%arg0: i32, %arg1: i32, %arg2: i32) -> (i32, i32, i32) {
    %c0_i32 = arith.constant 0 : i32
    %c0_i32_0 = arith.constant 0 : i32
    %c0_i32_1 = arith.constant 0 : i32
    return %arg0, %c0_i32, %c0_i32_0 : i32, i32, i32
  }
  func.func @transform_3(%arg0: i32, %arg1: i32, %arg2: i32) -> (i32, i32, i32) {
    %c0_i32 = arith.constant 0 : i32
    %c0_i32_0 = arith.constant 0 : i32
    %c0_i32_1 = arith.constant 0 : i32
    return %arg0, %c0_i32, %c0_i32_0 : i32, i32, i32
  }
  func.func @transform_4(%arg0: i32, %arg1: i32, %arg2: i32) -> (i32, i32) {
    %c0_i32 = arith.constant 0 : i32
    %c0_i32_0 = arith.constant 0 : i32
    %c0_i32_1 = arith.constant 0 : i32
    return %c0_i32, %c0_i32_0 : i32, i32
  }
  func.func @transform_5(%arg0: i32, %arg1: i32, %arg2: i32) -> (i32, i32) {
    %c0_i32 = arith.constant 0 : i32
    %c0_i32_0 = arith.constant 0 : i32
    %c0_i32_1 = arith.constant 0 : i32
    return %c0_i32, %c0_i32_0 : i32, i32
  }
  func.func @transform_6(%arg0: i32, %arg1: i32, %arg2: i32) -> (i32, i32) {
    %c0_i32 = arith.constant 0 : i32
    %c0_i32_0 = arith.constant 0 : i32
    %c0_i32_1 = arith.constant 0 : i32
    return %c0_i32, %c0_i32_0 : i32, i32
  }
  func.func @transform_7(%arg0: i32, %arg1: i32, %arg2: i32) -> (i32, i32) {
    %c0_i32 = arith.constant 0 : i32
    %c0_i32_0 = arith.constant 0 : i32
    %c0_i32_1 = arith.constant 0 : i32
    return %c0_i32, %c0_i32_0 : i32, i32
  }
  func.func @transform_8(%arg0: i32, %arg1: i32, %arg2: i32) -> (i32, i32) {
    %c0_i32 = arith.constant 0 : i32
    %c0_i32_0 = arith.constant 0 : i32
    %c0_i32_1 = arith.constant 0 : i32
    return %c0_i32, %c0_i32_0 : i32, i32
  }
  func.func @transform_9(%arg0: i32, %arg1: i32, %arg2: i32) -> (i32, i32) {
    %c0_i32 = arith.constant 0 : i32
    %c0_i32_0 = arith.constant 0 : i32
    %c0_i32_1 = arith.constant 0 : i32
    return %c0_i32, %c0_i32_0 : i32, i32
  }
  func.func @transform_10(%arg0: i32, %arg1: i32, %arg2: i32) -> (i32, i32) {
    %c0_i32 = arith.constant 0 : i32
    %c0_i32_0 = arith.constant 0 : i32
    %c0_i32_1 = arith.constant 0 : i32
    return %c0_i32, %c0_i32_0 : i32, i32
  }
  func.func @transform_11(%arg0: i32, %arg1: i32, %arg2: i32) -> (i32, i32) {
    %c0_i32 = arith.constant 0 : i32
    %c0_i32_0 = arith.constant 0 : i32
    %c0_i32_1 = arith.constant 0 : i32
    return %c0_i32, %c0_i32_0 : i32, i32
  }
  func.func @transform_12(%arg0: i32, %arg1: i32, %arg2: i32) -> (i32, i32, i32) {
    %c0_i32 = arith.constant 0 : i32
    %c0_i32_0 = arith.constant 0 : i32
    return %arg0, %c0_i32, %arg1 : i32, i32, i32
  }
}

</mosaic_0001>

<llo_original>
// kernel: vae_attention_block.2
$region0: #{vae_attention_block.2}
  #allocation0 [shape = 'u32[]', space=smem, size = 0x4, offset = 0x4, fixed_abs, tag = 'smem constant byte address 0x4 - core index']
  #allocation1 [shape = 'u32[144,128]{1,0:T(1,128)}', space=vmem, size = 0x12000, scoped, tag = 'internal scratch']
  %s0 = inlined_call_operand.vmem [shape: f32[2,64,64], index: 0, kind: input, shape index: {}]
  %s1 = inlined_call_operand.vmem [shape: f32[2,64,1], index: 1, kind: output, shape index: {0}]
  %s2 = inlined_call_operand.vmem [shape: f32[2,64,1], index: 2, kind: output, shape index: {1}]
  %3 = xla_tuple %s1, %s2
  %s4 = sld [smem:[#allocation0]]
  $region49: #{vae_attention_block.2} parent=0
    _
  %s6 = ssub.s32 1, %s4
  %s7 = scalar_select 0, %s6, %s4
  loop: start=0, step=1, limit=4
  $region2: #{vae_attention_block.2} parent=0 // loop_pre_header
    _
  $region3: #{vae_attention_block.2} parent=0 // loop_header
    %s9 = sphi 0, %s13
    %p10 = scmp.ge.s32.totalorder %s9, 4
    %s16 = sphi 0, %s28
    %s17 = sphi 0, %s24
    %s18 = sphi 0, %s16
    %s19 = sphi 0, %s17
    %s20 = sphi 0, %s18
    %s21 = sphi 0, %s19
    %s33 = sphi 0, %s35
    %s36 = sphi 0, %s33
    %s37 = sphi 0, %s36
    %s53 = sphi 0, %s37
    %s59 = sphi 0, %s61
    %s62 = sphi 0, %s59
    %s63 = sphi 0, %s62
    %s79 = sphi 0, %s63
    %s85 = sphi 0, %s87
    %s88 = sphi 0, %s85
    %s89 = sphi 0, %s88
    %s105 = sphi 0, %s89
  $region4: #{vae_attention_block.2} parent=0 // loop_header_branch
    %12 = sbr.rel (%p10) target = $region8
  $region5: #{vae_attention_block.2} parent=0 // loop_body
    %s14 = ssub.s32 %s9, 1
    %s15 = ssub.s32 %s9, 2
    %s22 = sadd.s32 1, %s17
    %p23 = scmp.ge.s32.totalorder %s22, 1
    %s24 = scalar_select %p23, 0, %s22
    %s25 = sadd.s32 1, %s16
    %s26 = scalar_select %p23, %s25, %s16
    %p27 = scmp.ge.s32.totalorder %s26, 2
    %s28 = scalar_select %p27, 0, %s26
    %s29 = ssub.s32 %s16, %s28
    %s30 = ssub.s32 %s17, %s24
    %s31 = sor.u32 %s29, %s30
    %p32 = scmp.eq.s32.totalorder %s31, 0
    %s34 = sadd.s32 %s33, 1
    %s35 = scalar_select %p32, %s33, %s34
    %p38 = pneg %p32
    %p39 = scmp.eq.s32.totalorder %s9, 1
    %p40 = por %p38, %p39
    %p41 = scmp.ne.s32.totalorder %s33, %s36
    %p42 = scmp.eq.s32.totalorder %s9, 0
    %p43 = por %p41, %p42
    %p44 = scmp.ne.s32.totalorder %s33, %s36
    %p45 = scmp.eq.s32.totalorder %s14, 1
    %p46 = por %p44, %p45
    %p47 = scmp.ne.s32.totalorder %s36, %s37
    %p48 = scmp.eq.s32.totalorder %s14, 0
    %p49 = por %p47, %p48
    %p50 = scmp.ne.s32.totalorder %s36, %s37
    %p51 = scmp.eq.s32.totalorder %s15, 1
    %p52 = por %p50, %p51
    %p54 = scmp.ne.s32.totalorder %s37, %s53
    %p55 = scmp.eq.s32.totalorder %s15, 0
    %p56 = por %p54, %p55
    %s57 = ssub.s32 %s16, %s28
    %p58 = scmp.eq.s32.totalorder %s57, 0
    %s60 = sadd.s32 %s59, 1
    %s61 = scalar_select %p58, %s59, %s60
    %p64 = pneg %p58
    %p65 = scmp.eq.s32.totalorder %s9, 1
    %p66 = por %p64, %p65
    %p67 = scmp.ne.s32.totalorder %s59, %s62
    %p68 = scmp.eq.s32.totalorder %s9, 0
    %p69 = por %p67, %p68
    %p70 = scmp.ne.s32.totalorder %s59, %s62
    %p71 = scmp.eq.s32.totalorder %s14, 1
    %p72 = por %p70, %p71
    %p73 = scmp.ne.s32.totalorder %s62, %s63
    %p74 = scmp.eq.s32.totalorder %s14, 0
    %p75 = por %p73, %p74
    %p76 = scmp.ne.s32.totalorder %s62, %s63
    %p77 = scmp.eq.s32.totalorder %s15, 1
    %p78 = por %p76, %p77
    %p80 = scmp.ne.s32.totalorder %s63, %s79
    %p81 = scmp.eq.s32.totalorder %s15, 0
    %p82 = por %p80, %p81
    %s83 = ssub.s32 %s16, %s28
    %p84 = scmp.eq.s32.totalorder %s83, 0
    %s86 = sadd.s32 %s85, 1
    %s87 = scalar_select %p84, %s85, %s86
    %p90 = pneg %p84
    %p91 = scmp.eq.s32.totalorder %s9, 1
    %p92 = por %p90, %p91
    %p93 = scmp.ne.s32.totalorder %s85, %s88
    %p94 = scmp.eq.s32.totalorder %s9, 0
    %p95 = por %p93, %p94
    %p96 = scmp.ne.s32.totalorder %s85, %s88
    %p97 = scmp.eq.s32.totalorder %s14, 1
    %p98 = por %p96, %p97
    %p99 = scmp.ne.s32.totalorder %s88, %s89
    %p100 = scmp.eq.s32.totalorder %s14, 0
    %p101 = por %p99, %p100
    %p102 = scmp.ne.s32.totalorder %s88, %s89
    %p103 = scmp.eq.s32.totalorder %s15, 1
    %p104 = por %p102, %p103
    %p106 = scmp.ne.s32.totalorder %s89, %s105
    %p107 = scmp.eq.s32.totalorder %s15, 0
    %p108 = por %p106, %p107
    %p109 = scmp.le.s32.totalorder 1, %s9
    %p110 = scmp.lt.s32.totalorder %s9, 3
    %p111 = pnand %p109, %p110
    %p112 = pneg %p111
    // Predicated region
    $region9: #{vae_attention_block.2} parent=5 // pred_check
      _
    $region10: #{vae_attention_block.2} parent=5 // pred_check_branch
      %114 = sbr.rel (%p111) target = $region12
    $region11: #{vae_attention_block.2} parent=5 // pred_region
      %s115 = ssub.s32 %s9, 1
    $region12: #{vae_attention_block.2} parent=5 // pred_fallthru
      _
    %p116 = scmp.lt.s32.totalorder %s9, 2
    // Predicated region
    $region13: #{vae_attention_block.2} parent=5 // pred_check
      %p117 = pneg %p116
    $region14: #{vae_attention_block.2} parent=5 // pred_check_branch
      %119 = sbr.rel (%p117) target = $region16
    $region15: #{vae_attention_block.2} parent=5 // pred_region
      // Predicated region
      $region17: #{vae_attention_block.2} parent=15 // pred_check
        %p120 = pneg %p43
      $region18: #{vae_attention_block.2} parent=15 // pred_check_branch
        %122 = sbr.rel (%p120) target = $region20
      $region19: #{vae_attention_block.2} parent=15 // pred_region
        %p123 = scmp.lt.s32.totalorder %s16, 1
        %s124 = scalar_select %p123, %s16, 1
        %p125 = scmp.lt.s32.totalorder %s17, 0
        %s126 = scalar_select %p125, %s17, 0
        %s127 = smul.addr %s124, 8
        %s128 = sadd.s32 %s126, %s127
        %s129 = smul.addr %s128, 8
        %s130 = scalar_lea.vmem %s0, %s129
      $region20: #{vae_attention_block.2} parent=15 // pred_fallthru
        _
    $region16: #{vae_attention_block.2} parent=5 // pred_fallthru
      _
    %p131 = scmp.le.s32.totalorder 1, %s9
    %p132 = scmp.lt.s32.totalorder %s9, 3
    %p133 = pnand %p131, %p132
    %p134 = pneg %p133
    // Predicated region
    $region21: #{vae_attention_block.2} parent=5 // pred_check
      _
    $region22: #{vae_attention_block.2} parent=5 // pred_check_branch
      %136 = sbr.rel (%p133) target = $region24
    $region23: #{vae_attention_block.2} parent=5 // pred_region
      %s137 = ssub.s32 %s9, 1
      %p138 = scmp.lt.s32.totalorder %s18, 1
      %s139 = scalar_select %p138, %s18, 1
      %p140 = scmp.lt.s32.totalorder %s19, 0
      %s141 = scalar_select %p140, %s19, 0
      %s142 = smul.addr %s139, 8
      %s143 = sadd.s32 %s141, %s142
      %s144 = smul.addr %s143, 8
      %s145 = scalar_lea.vmem %s0, %s144
      %p146 = pneg %p49
      %p147 = pneg %p46
      %p148 = pneg %p75
      %p149 = pneg %p72
      %p150 = scmp.lt.s32.totalorder %s18, 1
      %s151 = scalar_select %p150, %s18, 1
      %s152 = smul.addr %s151, 8
      %s153 = smul.addr %s152, 8
      %s154 = scalar_lea.vmem %s1, %s153
      %p155 = pneg %p101
      %p156 = pneg %p98
      %p157 = scmp.lt.s32.totalorder %s18, 1
      %s158 = scalar_select %p157, %s18, 1
      %s159 = smul.addr %s158, 8
      %s160 = smul.addr %s159, 8
      %s161 = scalar_lea.vmem %s2, %s160
      %p162 = scmp.lt.s32.totalorder %s18, 1
      %s163 = scalar_select %p162, %s18, 1
      %p164 = scmp.lt.s32.totalorder %s19, 0
      %s165 = scalar_select %p164, %s19, 0
      %s166 = smul.addr %s163, 8
      %s167 = sadd.s32 %s165, %s166
      %s168 = smul.addr %s167, 8
      %s169 = scalar_lea.vmem %s0, %s168
      %p170 = scmp.lt.s32.totalorder %s18, 1
      %s171 = scalar_select %p170, %s18, 1
      %s172 = smul.addr %s171, 8
      %s173 = smul.addr %s172, 8
      %s174 = scalar_lea.vmem %s1, %s173
      %p175 = scmp.lt.s32.totalorder %s18, 1
      %s176 = scalar_select %p175, %s18, 1
      %s177 = smul.addr %s176, 8
      %s178 = smul.addr %s177, 8
      %s179 = scalar_lea.vmem %s2, %s178
      %p180 = scmp.eq.s32.totalorder %s19, 0
      // Predicated region
      $region25: #{vae_attention_block.2} parent=23 // pred_check
        %p181 = pneg %p180
      $region26: #{vae_attention_block.2} parent=23 // pred_check_branch
        %183 = sbr.rel (%p181) target = $region28
      $region27: #{vae_attention_block.2} parent=23 // pred_region
        %vm184 = vcmask 7168
        %185 = vst.msk [vmem:[%s174] sm:$0xff] %vm184, 0.0
        %186 = vst.msk [vmem:[%s174 + $0x8] sm:$0xff] %vm184, 0.0
        %187 = vst.msk [vmem:[%s174 + $0x10] sm:$0xff] %vm184, 0.0
        %188 = vst.msk [vmem:[%s174 + $0x18] sm:$0xff] %vm184, 0.0
        %189 = vst.msk [vmem:[%s174 + $0x20] sm:$0xff] %vm184, 0.0
        %190 = vst.msk [vmem:[%s174 + $0x28] sm:$0xff] %vm184, 0.0
        %191 = vst.msk [vmem:[%s174 + $0x30] sm:$0xff] %vm184, 0.0
        %192 = vst.msk [vmem:[%s174 + $0x38] sm:$0xff] %vm184, 0.0
        %193 = vst.msk [vmem:[%s179] sm:$0xff] %vm184, 0.0
        %194 = vst.msk [vmem:[%s179 + $0x8] sm:$0xff] %vm184, 0.0
        %195 = vst.msk [vmem:[%s179 + $0x10] sm:$0xff] %vm184, 0.0
        %196 = vst.msk [vmem:[%s179 + $0x18] sm:$0xff] %vm184, 0.0
        %197 = vst.msk [vmem:[%s179 + $0x20] sm:$0xff] %vm184, 0.0
        %198 = vst.msk [vmem:[%s179 + $0x28] sm:$0xff] %vm184, 0.0
        %199 = vst.msk [vmem:[%s179 + $0x30] sm:$0xff] %vm184, 0.0
        %200 = vst.msk [vmem:[%s179 + $0x38] sm:$0xff] %vm184, 0.0
      $region28: #{vae_attention_block.2} parent=23 // pred_fallthru
        _
      %v201 = vld [vmem:[%s169] sm:$0xff]
      %v202 = vld [vmem:[%s169 + $0x8] sm:$0xff]
      %v203 = vld [vmem:[%s169 + $0x10] sm:$0xff]
      %v204 = vld [vmem:[%s169 + $0x18] sm:$0xff]
      %v205 = vld [vmem:[%s169 + $0x20] sm:$0xff]
      %v206 = vld [vmem:[%s169 + $0x28] sm:$0xff]
      %v207 = vld [vmem:[%s169 + $0x30] sm:$0xff]
      %v208 = vld [vmem:[%s169 + $0x38] sm:$0xff]
      %v209 = vld [vmem:[%s174] sm:$0xff]
      %v210 = vld [vmem:[%s174 + $0x8] sm:$0xff]
      %v211 = vld [vmem:[%s174 + $0x10] sm:$0xff]
      %v212 = vld [vmem:[%s174 + $0x18] sm:$0xff]
      %v213 = vld [vmem:[%s174 + $0x20] sm:$0xff]
      %v214 = vld [vmem:[%s174 + $0x28] sm:$0xff]
      %v215 = vld [vmem:[%s174 + $0x30] sm:$0xff]
      %v216 = vld [vmem:[%s174 + $0x38] sm:$0xff]
      %vm217 = vcmask 523264
      %v218 = vsel %vm217, %v201, 0.0
      %219 = vadd.xlane.f32.xlu0 %v218
      %v220 = vpop.xlane.xlu0 %219
      %v221 = vsel %vm217, %v202, 0.0
      %222 = vadd.xlane.f32.xlu0 %v221
      %v223 = vpop.xlane.xlu0 %222
      %v224 = vsel %vm217, %v203, 0.0
      %225 = vadd.xlane.f32.xlu0 %v224
      %v226 = vpop.xlane.xlu0 %225
      %v227 = vsel %vm217, %v204, 0.0
      %228 = vadd.xlane.f32.xlu0 %v227
      %v229 = vpop.xlane.xlu0 %228
      %v230 = vsel %vm217, %v205, 0.0
      %231 = vadd.xlane.f32.xlu0 %v230
      %v232 = vpop.xlane.xlu0 %231
      %v233 = vsel %vm217, %v206, 0.0
      %234 = vadd.xlane.f32.xlu0 %v233
      %v235 = vpop.xlane.xlu0 %234
      %v236 = vsel %vm217, %v207, 0.0
      %237 = vadd.xlane.f32.xlu0 %v236
      %v238 = vpop.xlane.xlu0 %237
      %v239 = vsel %vm217, %v208, 0.0
      %240 = vadd.xlane.f32.xlu0 %v239
      %v241 = vpop.xlane.xlu0 %240
      %v242 = vadd.f32 %v209, %v220
      %v243 = vadd.f32 %v210, %v223
      %v244 = vadd.f32 %v211, %v226
      %v245 = vadd.f32 %v212, %v229
      %v246 = vadd.f32 %v213, %v232
      %v247 = vadd.f32 %v214, %v235
      %v248 = vadd.f32 %v215, %v238
      %v249 = vadd.f32 %v216, %v241
      %vm250 = vcmask 7168
      %251 = vst.msk [vmem:[%s174] sm:$0xff] %vm250, %v242
      %252 = vst.msk [vmem:[%s174 + $0x8] sm:$0xff] %vm250, %v243
      %253 = vst.msk [vmem:[%s174 + $0x10] sm:$0xff] %vm250, %v244
      %254 = vst.msk [vmem:[%s174 + $0x18] sm:$0xff] %vm250, %v245
      %255 = vst.msk [vmem:[%s174 + $0x20] sm:$0xff] %vm250, %v246
      %256 = vst.msk [vmem:[%s174 + $0x28] sm:$0xff] %vm250, %v247
      %257 = vst.msk [vmem:[%s174 + $0x30] sm:$0xff] %vm250, %v248
      %258 = vst.msk [vmem:[%s174 + $0x38] sm:$0xff] %vm250, %v249
      %v259 = vld [vmem:[%s179] sm:$0xff]
      %v260 = vld [vmem:[%s179 + $0x8] sm:$0xff]
      %v261 = vld [vmem:[%s179 + $0x10] sm:$0xff]
      %v262 = vld [vmem:[%s179 + $0x18] sm:$0xff]
      %v263 = vld [vmem:[%s179 + $0x20] sm:$0xff]
      %v264 = vld [vmem:[%s179 + $0x28] sm:$0xff]
      %v265 = vld [vmem:[%s179 + $0x30] sm:$0xff]
      %v266 = vld [vmem:[%s179 + $0x38] sm:$0xff]
      %v267 = vmul.f32 %v201, %v201
      %v268 = vmul.f32 %v202, %v202
      %v269 = vmul.f32 %v203, %v203
      %v270 = vmul.f32 %v204, %v204
      %v271 = vmul.f32 %v205, %v205
      %v272 = vmul.f32 %v206, %v206
      %v273 = vmul.f32 %v207, %v207
      %v274 = vmul.f32 %v208, %v208
      %v275 = vsel %vm217, %v267, 0.0
      %276 = vadd.xlane.f32.xlu0 %v275
      %v277 = vpop.xlane.xlu0 %276
      %v278 = vsel %vm217, %v268, 0.0
      %279 = vadd.xlane.f32.xlu0 %v278
      %v280 = vpop.xlane.xlu0 %279
      %v281 = vsel %vm217, %v269, 0.0
      %282 = vadd.xlane.f32.xlu0 %v281
      %v283 = vpop.xlane.xlu0 %282
      %v284 = vsel %vm217, %v270, 0.0
      %285 = vadd.xlane.f32.xlu0 %v284
      %v286 = vpop.xlane.xlu0 %285
      %v287 = vsel %vm217, %v271, 0.0
      %288 = vadd.xlane.f32.xlu0 %v287
      %v289 = vpop.xlane.xlu0 %288
      %v290 = vsel %vm217, %v272, 0.0
      %291 = vadd.xlane.f32.xlu0 %v290
      %v292 = vpop.xlane.xlu0 %291
      %v293 = vsel %vm217, %v273, 0.0
      %294 = vadd.xlane.f32.xlu0 %v293
      %v295 = vpop.xlane.xlu0 %294
      %v296 = vsel %vm217, %v274, 0.0
      %297 = vadd.xlane.f32.xlu0 %v296
      %v298 = vpop.xlane.xlu0 %297
      %v299 = vadd.f32 %v259, %v277
      %v300 = vadd.f32 %v260, %v280
      %v301 = vadd.f32 %v261, %v283
      %v302 = vadd.f32 %v262, %v286
      %v303 = vadd.f32 %v263, %v289
      %v304 = vadd.f32 %v264, %v292
      %v305 = vadd.f32 %v265, %v295
      %v306 = vadd.f32 %v266, %v298
      %307 = vst.msk [vmem:[%s179] sm:$0xff] %vm250, %v299
      %308 = vst.msk [vmem:[%s179 + $0x8] sm:$0xff] %vm250, %v300
      %309 = vst.msk [vmem:[%s179 + $0x10] sm:$0xff] %vm250, %v301
      %310 = vst.msk [vmem:[%s179 + $0x18] sm:$0xff] %vm250, %v302
      %311 = vst.msk [vmem:[%s179 + $0x20] sm:$0xff] %vm250, %v303
      %312 = vst.msk [vmem:[%s179 + $0x28] sm:$0xff] %vm250, %v304
      %313 = vst.msk [vmem:[%s179 + $0x30] sm:$0xff] %vm250, %v305
      %314 = vst.msk [vmem:[%s179 + $0x38] sm:$0xff] %vm250, %v306
      %p315 = scmp.lt.s32.totalorder %s18, 1
      %s316 = scalar_select %p315, %s18, 1
      %s317 = smul.addr %s316, 8
      %s318 = smul.addr %s317, 8
      %s319 = scalar_lea.vmem %s1, %s318
      %p320 = scmp.lt.s32.totalorder %s18, 1
      %s321 = scalar_select %p320, %s18, 1
      %s322 = smul.addr %s321, 8
      %s323 = smul.addr %s322, 8
      %s324 = scalar_lea.vmem %s2, %s323
      // Predicated region
      $region29: #{vae_attention_block.2} parent=23 // pred_check
        %p325 = pneg %p72
      $region30: #{vae_attention_block.2} parent=23 // pred_check_branch
        %327 = sbr.rel (%p325) target = $region32
      $region31: #{vae_attention_block.2} parent=23 // pred_region
        _
      $region32: #{vae_attention_block.2} parent=23 // pred_fallthru
        _
      // Predicated region
      $region33: #{vae_attention_block.2} parent=23 // pred_check
        %p328 = pneg %p98
      $region34: #{vae_attention_block.2} parent=23 // pred_check_branch
        %330 = sbr.rel (%p328) target = $region36
      $region35: #{vae_attention_block.2} parent=23 // pred_region
        _
      $region36: #{vae_attention_block.2} parent=23 // pred_fallthru
        _
    $region24: #{vae_attention_block.2} parent=5 // pred_fallthru
      _
    %p331 = scmp.le.s32.totalorder 2, %s9
    // Predicated region
    $region37: #{vae_attention_block.2} parent=5 // pred_check
      %p332 = pneg %p331
    $region38: #{vae_attention_block.2} parent=5 // pred_check_branch
      %334 = sbr.rel (%p332) target = $region40
    $region39: #{vae_attention_block.2} parent=5 // pred_region
      %s335 = ssub.s32 %s9, 2
      // Predicated region
      $region41: #{vae_attention_block.2} parent=39 // pred_check
        %p336 = pneg %p78
      $region42: #{vae_attention_block.2} parent=39 // pred_check_branch
        %338 = sbr.rel (%p336) target = $region44
      $region43: #{vae_attention_block.2} parent=39 // pred_region
        %p339 = scmp.lt.s32.totalorder %s20, 1
        %s340 = scalar_select %p339, %s20, 1
        %s341 = smul.addr %s340, 8
        %s342 = smul.addr %s341, 8
        %s343 = scalar_lea.vmem %s1, %s342
      $region44: #{vae_attention_block.2} parent=39 // pred_fallthru
        _
      // Predicated region
      $region45: #{vae_attention_block.2} parent=39 // pred_check
        %p344 = pneg %p104
      $region46: #{vae_attention_block.2} parent=39 // pred_check_branch
        %346 = sbr.rel (%p344) target = $region48
      $region47: #{vae_attention_block.2} parent=39 // pred_region
        %p347 = scmp.lt.s32.totalorder %s20, 1
        %s348 = scalar_select %p347, %s20, 1
        %s349 = smul.addr %s348, 8
        %s350 = smul.addr %s349, 8
        %s351 = scalar_lea.vmem %s2, %s350
      $region48: #{vae_attention_block.2} parent=39 // pred_fallthru
        _
    $region40: #{vae_attention_block.2} parent=5 // pred_fallthru
      _
  $region6: #{vae_attention_block.2} parent=0 // loop_footer
    %s13 = sadd.s32 1, %s9
  $region7: #{vae_attention_block.2} parent=0 // loop_footer_branch
    %8 = sbr.rel target = $region3
  $region8: #{vae_attention_block.2} parent=0 // loop_exit
    _

// kernel: vae_attention_block.3
$region0: #{vae_attention_block.3}
  #allocation0 [shape = 'u32[]', space=smem, size = 0x4, offset = 0x4, fixed_abs, tag = 'smem constant byte address 0x4 - core index']
  #allocation1 [shape = 'u32[144,128]{1,0:T(1,128)}', space=vmem, size = 0x12000, scoped, tag = 'internal scratch']
  #allocation2 [shape = 'bf16[1,64,64]{2,1,0:T(8,128)(2,1)}', space=vmem, size = 0x4000, scoped, tag = 'scratch operand']
  #allocation3 [shape = 'bf16[1,64,64]{2,1,0:T(8,128)(2,1)}', space=vmem, size = 0x4000, scoped, tag = 'scratch operand']
  #allocation4 [shape = 'bf16[64,64]{1,0:T(8,128)(2,1)}', space=vmem, size = 0x4000, scoped, tag = 'scratch operand']
  #allocation5 [shape = 'f32[64,1]{1,0:T(8,128)}', space=vmem, size = 0x8000, scoped, tag = 'scratch operand']
  #allocation6 [shape = 'f32[64,1]{1,0:T(8,128)}', space=vmem, size = 0x8000, scoped, tag = 'scratch operand']
  #allocation7 [shape = 'f32[64,64]{1,0:T(8,128)}', space=vmem, size = 0x8000, scoped, tag = 'scratch operand']
  %s0 = inlined_call_operand.vmem [shape: f32[2,64,64], index: 0, kind: input, shape index: {}, may-alias: {0,1}]
  %s1 = inlined_call_operand.vmem [shape: f32[2,64,64], index: 1, kind: input, shape index: {}, may-alias: {0,1}]
  %s2 = inlined_call_operand.vmem [shape: f32[2,64,1], index: 2, kind: input, shape index: {}]
  %s3 = inlined_call_operand.vmem [shape: f32[2,64,1], index: 3, kind: input, shape index: {}]
  %s4 = inlined_call_operand.vmem [shape: bf16[64,64], index: 4, kind: input, shape index: {}]
  %s5 = inlined_call_operand.vmem [shape: f32[64,1], index: 5, kind: input, shape index: {}]
  %s6 = inlined_call_operand.vmem [shape: bf16[64,64], index: 6, kind: input, shape index: {}]
  %s7 = inlined_call_operand.vmem [shape: f32[64,1], index: 7, kind: input, shape index: {}]
  %s8 = inlined_call_operand.vmem [shape: bf16[64,64], index: 8, kind: input, shape index: {}]
  %s9 = inlined_call_operand.vmem [shape: f32[64,1], index: 9, kind: input, shape index: {}]
  %s10 = inlined_call_operand.vmem [shape: bf16[64,64], index: 10, kind: input, shape index: {}]
  %s11 = inlined_call_operand.vmem [shape: f32[64,1], index: 11, kind: input, shape index: {}]
  %s12 = inlined_call_operand.vmem [shape: f32[2,64,64], index: 12, kind: output, shape index: {}]
  %s13 = sld [smem:[#allocation0]]
  $region93: #{vae_attention_block.3} parent=0
    _
  %s15 = ssub.s32 1, %s13
  %s16 = scalar_select 0, %s15, %s13
  loop: start=0, step=1, limit=4
  $region2: #{vae_attention_block.3} parent=0 // loop_pre_header
    _
  $region3: #{vae_attention_block.3} parent=0 // loop_header
    %s18 = sphi 0, %s22
    %p19 = scmp.ge.s32.totalorder %s18, 4
    %s25 = sphi 0, %s44
    %s26 = sphi 0, %s40
    %s27 = sphi 0, %s36
    %s28 = sphi 0, %s25
    %s29 = sphi 0, %s26
    %s30 = sphi 0, %s27
    %s31 = sphi 0, %s28
    %s32 = sphi 0, %s29
    %s33 = sphi 0, %s30
    %s49 = sphi 0, %s51
    %s52 = sphi 0, %s49
    %s53 = sphi 0, %s52
    %s69 = sphi 0, %s53
    %s81 = sphi 0, %s83
    %s84 = sphi 0, %s81
    %s85 = sphi 0, %s84
    %s101 = sphi 0, %s85
    %s107 = sphi 0, %s109
    %s110 = sphi 0, %s107
    %s111 = sphi 0, %s110
    %s127 = sphi 0, %s111
    %s133 = sphi 0, %s135
    %s136 = sphi 0, %s133
    %s137 = sphi 0, %s136
    %s153 = sphi 0, %s137
    %s157 = sphi 0, %s157
    %s159 = sphi 0, %s157
    %s160 = sphi 0, %s159
    %s174 = sphi 0, %s160
    %s178 = sphi 0, %s178
    %s180 = sphi 0, %s178
    %s181 = sphi 0, %s180
    %s195 = sphi 0, %s181
    %s199 = sphi 0, %s199
    %s201 = sphi 0, %s199
    %s202 = sphi 0, %s201
    %s216 = sphi 0, %s202
    %s220 = sphi 0, %s220
    %s222 = sphi 0, %s220
    %s223 = sphi 0, %s222
    %s237 = sphi 0, %s223
    %s241 = sphi 0, %s241
    %s243 = sphi 0, %s241
    %s244 = sphi 0, %s243
    %s258 = sphi 0, %s244
    %s262 = sphi 0, %s262
    %s264 = sphi 0, %s262
    %s265 = sphi 0, %s264
    %s279 = sphi 0, %s265
    %s283 = sphi 0, %s283
    %s285 = sphi 0, %s283
    %s286 = sphi 0, %s285
    %s300 = sphi 0, %s286
    %s304 = sphi 0, %s304
    %s306 = sphi 0, %s304
    %s307 = sphi 0, %s306
    %s321 = sphi 0, %s307
    %s329 = sphi 0, %s331
    %s332 = sphi 0, %s329
    %s333 = sphi 0, %s332
    %s349 = sphi 0, %s333
  $region4: #{vae_attention_block.3} parent=0 // loop_header_branch
    %21 = sbr.rel (%p19) target = $region8
  $region5: #{vae_attention_block.3} parent=0 // loop_body
    %s23 = ssub.s32 %s18, 1
    %s24 = ssub.s32 %s18, 2
    %s34 = sadd.s32 1, %s27
    %p35 = scmp.ge.s32.totalorder %s34, 1
    %s36 = scalar_select %p35, 0, %s34
    %s37 = sadd.s32 1, %s26
    %s38 = scalar_select %p35, %s37, %s26
    %p39 = scmp.ge.s32.totalorder %s38, 1
    %s40 = scalar_select %p39, 0, %s38
    %s41 = sadd.s32 1, %s25
    %s42 = scalar_select %p39, %s41, %s25
    %p43 = scmp.ge.s32.totalorder %s42, 2
    %s44 = scalar_select %p43, 0, %s42
    %s45 = ssub.s32 %s25, %s44
    %s46 = ssub.s32 %s26, %s40
    %s47 = sor.u32 %s45, %s46
    %p48 = scmp.eq.s32.totalorder %s47, 0
    %s50 = sadd.s32 %s49, 1
    %s51 = scalar_select %p48, %s49, %s50
    %p54 = pneg %p48
    %p55 = scmp.eq.s32.totalorder %s18, 1
    %p56 = por %p54, %p55
    %p57 = scmp.ne.s32.totalorder %s49, %s52
    %p58 = scmp.eq.s32.totalorder %s18, 0
    %p59 = por %p57, %p58
    %p60 = scmp.ne.s32.totalorder %s49, %s52
    %p61 = scmp.eq.s32.totalorder %s23, 1
    %p62 = por %p60, %p61
    %p63 = scmp.ne.s32.totalorder %s52, %s53
    %p64 = scmp.eq.s32.totalorder %s23, 0
    %p65 = por %p63, %p64
    %p66 = scmp.ne.s32.totalorder %s52, %s53
    %p67 = scmp.eq.s32.totalorder %s24, 1
    %p68 = por %p66, %p67
    %p70 = scmp.ne.s32.totalorder %s53, %s69
    %p71 = scmp.eq.s32.totalorder %s24, 0
    %p72 = por %p70, %p71
    %p73 = scmp.eq.s32.totalorder %s26, 0
    %s74 = scalar_select %p73, %s27, 0
    %p75 = scmp.eq.s32.totalorder %s40, 0
    %s76 = scalar_select %p75, %s36, 0
    %s77 = ssub.s32 %s25, %s44
    %s78 = ssub.s32 %s74, %s76
    %s79 = sor.u32 %s77, %s78
    %p80 = scmp.eq.s32.totalorder %s79, 0
    %s82 = sadd.s32 %s81, 1
    %s83 = scalar_select %p80, %s81, %s82
    %p86 = pneg %p80
    %p87 = scmp.eq.s32.totalorder %s18, 1
    %p88 = por %p86, %p87
    %p89 = scmp.ne.s32.totalorder %s81, %s84
    %p90 = scmp.eq.s32.totalorder %s18, 0
    %p91 = por %p89, %p90
    %p92 = scmp.ne.s32.totalorder %s81, %s84
    %p93 = scmp.eq.s32.totalorder %s23, 1
    %p94 = por %p92, %p93
    %p95 = scmp.ne.s32.totalorder %s84, %s85
    %p96 = scmp.eq.s32.totalorder %s23, 0
    %p97 = por %p95, %p96
    %p98 = scmp.ne.s32.totalorder %s84, %s85
    %p99 = scmp.eq.s32.totalorder %s24, 1
    %p100 = por %p98, %p99
    %p102 = scmp.ne.s32.totalorder %s85, %s101
    %p103 = scmp.eq.s32.totalorder %s24, 0
    %p104 = por %p102, %p103
    %s105 = ssub.s32 %s25, %s44
    %p106 = scmp.eq.s32.totalorder %s105, 0
    %s108 = sadd.s32 %s107, 1
    %s109 = scalar_select %p106, %s107, %s108
    %p112 = pneg %p106
    %p113 = scmp.eq.s32.totalorder %s18, 1
    %p114 = por %p112, %p113
    %p115 = scmp.ne.s32.totalorder %s107, %s110
    %p116 = scmp.eq.s32.totalorder %s18, 0
    %p117 = por %p115, %p116
    %p118 = scmp.ne.s32.totalorder %s107, %s110
    %p119 = scmp.eq.s32.totalorder %s23, 1
    %p120 = por %p118, %p119
    %p121 = scmp.ne.s32.totalorder %s110, %s111
    %p122 = scmp.eq.s32.totalorder %s23, 0
    %p123 = por %p121, %p122
    %p124 = scmp.ne.s32.totalorder %s110, %s111
    %p125 = scmp.eq.s32.totalorder %s24, 1
    %p126 = por %p124, %p125
    %p128 = scmp.ne.s32.totalorder %s111, %s127
    %p129 = scmp.eq.s32.totalorder %s24, 0
    %p130 = por %p128, %p129
    %s131 = ssub.s32 %s25, %s44
    %p132 = scmp.eq.s32.totalorder %s131, 0
    %s134 = sadd.s32 %s133, 1
    %s135 = scalar_select %p132, %s133, %s134
    %p138 = pneg %p132
    %p139 = scmp.eq.s32.totalorder %s18, 1
    %p140 = por %p138, %p139
    %p141 = scmp.ne.s32.totalorder %s133, %s136
    %p142 = scmp.eq.s32.totalorder %s18, 0
    %p143 = por %p141, %p142
    %p144 = scmp.ne.s32.totalorder %s133, %s136
    %p145 = scmp.eq.s32.totalorder %s23, 1
    %p146 = por %p144, %p145
    %p147 = scmp.ne.s32.totalorder %s136, %s137
    %p148 = scmp.eq.s32.totalorder %s23, 0
    %p149 = por %p147, %p148
    %p150 = scmp.ne.s32.totalorder %s136, %s137
    %p151 = scmp.eq.s32.totalorder %s24, 1
    %p152 = por %p150, %p151
    %p154 = scmp.ne.s32.totalorder %s137, %s153
    %p155 = scmp.eq.s32.totalorder %s24, 0
    %p156 = por %p154, %p155
    %s158 = sadd.s32 %s157, 1
    %p161 = scmp.eq.s32.totalorder %s18, 1
    %p162 = scmp.ne.s32.totalorder %s157, %s159
    %p163 = scmp.eq.s32.totalorder %s18, 0
    %p164 = por %p162, %p163
    %p165 = scmp.ne.s32.totalorder %s157, %s159
    %p166 = scmp.eq.s32.totalorder %s23, 1
    %p167 = por %p165, %p166
    %p168 = scmp.ne.s32.totalorder %s159, %s160
    %p169 = scmp.eq.s32.totalorder %s23, 0
    %p170 = por %p168, %p169
    %p171 = scmp.ne.s32.totalorder %s159, %s160
    %p172 = scmp.eq.s32.totalorder %s24, 1
    %p173 = por %p171, %p172
    %p175 = scmp.ne.s32.totalorder %s160, %s174
    %p176 = scmp.eq.s32.totalorder %s24, 0
    %p177 = por %p175, %p176
    %s179 = sadd.s32 %s178, 1
    %p182 = scmp.eq.s32.totalorder %s18, 1
    %p183 = scmp.ne.s32.totalorder %s178, %s180
    %p184 = scmp.eq.s32.totalorder %s18, 0
    %p185 = por %p183, %p184
    %p186 = scmp.ne.s32.totalorder %s178, %s180
    %p187 = scmp.eq.s32.totalorder %s23, 1
    %p188 = por %p186, %p187
    %p189 = scmp.ne.s32.totalorder %s180, %s181
    %p190 = scmp.eq.s32.totalorder %s23, 0
    %p191 = por %p189, %p190
    %p192 = scmp.ne.s32.totalorder %s180, %s181
    %p193 = scmp.eq.s32.totalorder %s24, 1
    %p194 = por %p192, %p193
    %p196 = scmp.ne.s32.totalorder %s181, %s195
    %p197 = scmp.eq.s32.totalorder %s24, 0
    %p198 = por %p196, %p197
    %s200 = sadd.s32 %s199, 1
    %p203 = scmp.eq.s32.totalorder %s18, 1
    %p204 = scmp.ne.s32.totalorder %s199, %s201
    %p205 = scmp.eq.s32.totalorder %s18, 0
    %p206 = por %p204, %p205
    %p207 = scmp.ne.s32.totalorder %s199, %s201
    %p208 = scmp.eq.s32.totalorder %s23, 1
    %p209 = por %p207, %p208
    %p210 = scmp.ne.s32.totalorder %s201, %s202
    %p211 = scmp.eq.s32.totalorder %s23, 0
    %p212 = por %p210, %p211
    %p213 = scmp.ne.s32.totalorder %s201, %s202
    %p214 = scmp.eq.s32.totalorder %s24, 1
    %p215 = por %p213, %p214
    %p217 = scmp.ne.s32.totalorder %s202, %s216
    %p218 = scmp.eq.s32.totalorder %s24, 0
    %p219 = por %p217, %p218
    %s221 = sadd.s32 %s220, 1
    %p224 = scmp.eq.s32.totalorder %s18, 1
    %p225 = scmp.ne.s32.totalorder %s220, %s222
    %p226 = scmp.eq.s32.totalorder %s18, 0
    %p227 = por %p225, %p226
    %p228 = scmp.ne.s32.totalorder %s220, %s222
    %p229 = scmp.eq.s32.totalorder %s23, 1
    %p230 = por %p228, %p229
    %p231 = scmp.ne.s32.totalorder %s222, %s223
    %p232 = scmp.eq.s32.totalorder %s23, 0
    %p233 = por %p231, %p232
    %p234 = scmp.ne.s32.totalorder %s222, %s223
    %p235 = scmp.eq.s32.totalorder %s24, 1
    %p236 = por %p234, %p235
    %p238 = scmp.ne.s32.totalorder %s223, %s237
    %p239 = scmp.eq.s32.totalorder %s24, 0
    %p240 = por %p238, %p239
    %s242 = sadd.s32 %s241, 1
    %p245 = scmp.eq.s32.totalorder %s18, 1
    %p246 = scmp.ne.s32.totalorder %s241, %s243
    %p247 = scmp.eq.s32.totalorder %s18, 0
    %p248 = por %p246, %p247
    %p249 = scmp.ne.s32.totalorder %s241, %s243
    %p250 = scmp.eq.s32.totalorder %s23, 1
    %p251 = por %p249, %p250
    %p252 = scmp.ne.s32.totalorder %s243, %s244
    %p253 = scmp.eq.s32.totalorder %s23, 0
    %p254 = por %p252, %p253
    %p255 = scmp.ne.s32.totalorder %s243, %s244
    %p256 = scmp.eq.s32.totalorder %s24, 1
    %p257 = por %p255, %p256
    %p259 = scmp.ne.s32.totalorder %s244, %s258
    %p260 = scmp.eq.s32.totalorder %s24, 0
    %p261 = por %p259, %p260
    %s263 = sadd.s32 %s262, 1
    %p266 = scmp.eq.s32.totalorder %s18, 1
    %p267 = scmp.ne.s32.totalorder %s262, %s264
    %p268 = scmp.eq.s32.totalorder %s18, 0
    %p269 = por %p267, %p268
    %p270 = scmp.ne.s32.totalorder %s262, %s264
    %p271 = scmp.eq.s32.totalorder %s23, 1
    %p272 = por %p270, %p271
    %p273 = scmp.ne.s32.totalorder %s264, %s265
    %p274 = scmp.eq.s32.totalorder %s23, 0
    %p275 = por %p273, %p274
    %p276 = scmp.ne.s32.totalorder %s264, %s265
    %p277 = scmp.eq.s32.totalorder %s24, 1
    %p278 = por %p276, %p277
    %p280 = scmp.ne.s32.totalorder %s265, %s279
    %p281 = scmp.eq.s32.totalorder %s24, 0
    %p282 = por %p280, %p281
    %s284 = sadd.s32 %s283, 1
    %p287 = scmp.eq.s32.totalorder %s18, 1
    %p288 = scmp.ne.s32.totalorder %s283, %s285
    %p289 = scmp.eq.s32.totalorder %s18, 0
    %p290 = por %p288, %p289
    %p291 = scmp.ne.s32.totalorder %s283, %s285
    %p292 = scmp.eq.s32.totalorder %s23, 1
    %p293 = por %p291, %p292
    %p294 = scmp.ne.s32.totalorder %s285, %s286
    %p295 = scmp.eq.s32.totalorder %s23, 0
    %p296 = por %p294, %p295
    %p297 = scmp.ne.s32.totalorder %s285, %s286
    %p298 = scmp.eq.s32.totalorder %s24, 1
    %p299 = por %p297, %p298
    %p301 = scmp.ne.s32.totalorder %s286, %s300
    %p302 = scmp.eq.s32.totalorder %s24, 0
    %p303 = por %p301, %p302
    %s305 = sadd.s32 %s304, 1
    %p308 = scmp.eq.s32.totalorder %s18, 1
    %p309 = scmp.ne.s32.totalorder %s304, %s306
    %p310 = scmp.eq.s32.totalorder %s18, 0
    %p311 = por %p309, %p310
    %p312 = scmp.ne.s32.totalorder %s304, %s306
    %p313 = scmp.eq.s32.totalorder %s23, 1
    %p314 = por %p312, %p313
    %p315 = scmp.ne.s32.totalorder %s306, %s307
    %p316 = scmp.eq.s32.totalorder %s23, 0
    %p317 = por %p315, %p316
    %p318 = scmp.ne.s32.totalorder %s306, %s307
    %p319 = scmp.eq.s32.totalorder %s24, 1
    %p320 = por %p318, %p319
    %p322 = scmp.ne.s32.totalorder %s307, %s321
    %p323 = scmp.eq.s32.totalorder %s24, 0
    %p324 = por %p322, %p323
    %s325 = ssub.s32 %s25, %s44
    %s326 = ssub.s32 %s26, %s40
    %s327 = sor.u32 %s325, %s326
    %p328 = scmp.eq.s32.totalorder %s327, 0
    %s330 = sadd.s32 %s329, 1
    %s331 = scalar_select %p328, %s329, %s330
    %p334 = pneg %p328
    %p335 = scmp.eq.s32.totalorder %s18, 1
    %p336 = por %p334, %p335
    %p337 = scmp.ne.s32.totalorder %s329, %s332
    %p338 = scmp.eq.s32.totalorder %s18, 0
    %p339 = por %p337, %p338
    %p340 = scmp.ne.s32.totalorder %s329, %s332
    %p341 = scmp.eq.s32.totalorder %s23, 1
    %p342 = por %p340, %p341
    %p343 = scmp.ne.s32.totalorder %s332, %s333
    %p344 = scmp.eq.s32.totalorder %s23, 0
    %p345 = por %p343, %p344
    %p346 = scmp.ne.s32.totalorder %s332, %s333
    %p347 = scmp.eq.s32.totalorder %s24, 1
    %p348 = por %p346, %p347
    %p350 = scmp.ne.s32.totalorder %s333, %s349
    %p351 = scmp.eq.s32.totalorder %s24, 0
    %p352 = por %p350, %p351
    %p353 = scmp.le.s32.totalorder 1, %s18
    %p354 = scmp.lt.s32.totalorder %s18, 3
    %p355 = pnand %p353, %p354
    %p356 = pneg %p355
    // Predicated region
    $region9: #{vae_attention_block.3} parent=5 // pred_check
      _
    $region10: #{vae_attention_block.3} parent=5 // pred_check_branch
      %358 = sbr.rel (%p355) target = $region12
    $region11: #{vae_attention_block.3} parent=5 // pred_region
      %s359 = ssub.s32 %s18, 1
      // Predicated region
      $region13: #{vae_attention_block.3} parent=11 // pred_check
        %p360 = pneg %p170
      $region14: #{vae_attention_block.3} parent=11 // pred_check_branch
        %362 = sbr.rel (%p360) target = $region16
      $region15: #{vae_attention_block.3} parent=11 // pred_region
        _
      $region16: #{vae_attention_block.3} parent=11 // pred_fallthru
        _
      // Predicated region
      $region17: #{vae_attention_block.3} parent=11 // pred_check
        %p363 = pneg %p191
      $region18: #{vae_attention_block.3} parent=11 // pred_check_branch
        %365 = sbr.rel (%p363) target = $region20
      $region19: #{vae_attention_block.3} parent=11 // pred_region
        _
      $region20: #{vae_attention_block.3} parent=11 // pred_fallthru
        _
      // Predicated region
      $region21: #{vae_attention_block.3} parent=11 // pred_check
        %p366 = pneg %p212
      $region22: #{vae_attention_block.3} parent=11 // pred_check_branch
        %368 = sbr.rel (%p366) target = $region24
      $region23: #{vae_attention_block.3} parent=11 // pred_region
        _
      $region24: #{vae_attention_block.3} parent=11 // pred_fallthru
        _
      // Predicated region
      $region25: #{vae_attention_block.3} parent=11 // pred_check
        %p369 = pneg %p233
      $region26: #{vae_attention_block.3} parent=11 // pred_check_branch
        %371 = sbr.rel (%p369) target = $region28
      $region27: #{vae_attention_block.3} parent=11 // pred_region
        _
      $region28: #{vae_attention_block.3} parent=11 // pred_fallthru
        _
      // Predicated region
      $region29: #{vae_attention_block.3} parent=11 // pred_check
        %p372 = pneg %p254
      $region30: #{vae_attention_block.3} parent=11 // pred_check_branch
        %374 = sbr.rel (%p372) target = $region32
      $region31: #{vae_attention_block.3} parent=11 // pred_region
        _
      $region32: #{vae_attention_block.3} parent=11 // pred_fallthru
        _
      // Predicated region
      $region33: #{vae_attention_block.3} parent=11 // pred_check
        %p375 = pneg %p275
      $region34: #{vae_attention_block.3} parent=11 // pred_check_branch
        %377 = sbr.rel (%p375) target = $region36
      $region35: #{vae_attention_block.3} parent=11 // pred_region
        _
      $region36: #{vae_attention_block.3} parent=11 // pred_fallthru
        _
      // Predicated region
      $region37: #{vae_attention_block.3} parent=11 // pred_check
        %p378 = pneg %p296
      $region38: #{vae_attention_block.3} parent=11 // pred_check_branch
        %380 = sbr.rel (%p378) target = $region40
      $region39: #{vae_attention_block.3} parent=11 // pred_region
        _
      $region40: #{vae_attention_block.3} parent=11 // pred_fallthru
        _
      // Predicated region
      $region41: #{vae_attention_block.3} parent=11 // pred_check
        %p381 = pneg %p317
      $region42: #{vae_attention_block.3} parent=11 // pred_check_branch
        %383 = sbr.rel (%p381) target = $region44
      $region43: #{vae_attention_block.3} parent=11 // pred_region
        _
      $region44: #{vae_attention_block.3} parent=11 // pred_fallthru
        _
    $region12: #{vae_attention_block.3} parent=5 // pred_fallthru
      _
    %p384 = scmp.lt.s32.totalorder %s18, 2
    // Predicated region
    $region45: #{vae_attention_block.3} parent=5 // pred_check
      %p385 = pneg %p384
    $region46: #{vae_attention_block.3} parent=5 // pred_check_branch
      %387 = sbr.rel (%p385) target = $region48
    $region47: #{vae_attention_block.3} parent=5 // pred_region
      // Predicated region
      $region49: #{vae_attention_block.3} parent=47 // pred_check
        %p388 = pneg %p59
      $region50: #{vae_attention_block.3} parent=47 // pred_check_branch
        %390 = sbr.rel (%p388) target = $region52
      $region51: #{vae_attention_block.3} parent=47 // pred_region
        %p391 = scmp.lt.s32.totalorder %s25, 1
        %s392 = scalar_select %p391, %s25, 1
        %p393 = scmp.lt.s32.totalorder %s26, 0
        %s394 = scalar_select %p393, %s26, 0
        %s395 = smul.addr %s392, 8
        %s396 = sadd.s32 %s394, %s395
        %s397 = smul.addr %s396, 8
        %s398 = scalar_lea.vmem %s0, %s397
      $region52: #{vae_attention_block.3} parent=47 // pred_fallthru
        _
      // Predicated region
      $region53: #{vae_attention_block.3} parent=47 // pred_check
        %p399 = pneg %p91
      $region54: #{vae_attention_block.3} parent=47 // pred_check_branch
        %401 = sbr.rel (%p399) target = $region56
      $region55: #{vae_attention_block.3} parent=47 // pred_region
        %p402 = scmp.eq.s32.totalorder %s26, 0
        %s403 = scalar_select %p402, %s27, 0
        %p404 = scmp.lt.s32.totalorder %s25, 1
        %s405 = scalar_select %p404, %s25, 1
        %p406 = scmp.lt.s32.totalorder %s403, 0
        %s407 = scalar_select %p406, %s403, 0
        %s408 = smul.addr %s405, 8
        %s409 = sadd.s32 %s407, %s408
        %s410 = smul.addr %s409, 8
        %s411 = scalar_lea.vmem %s1, %s410
        %p412 = scmp.eq.s32.totalorder %s26, 0
        %s413 = scalar_select %p412, %s27, 0
      $region56: #{vae_attention_block.3} parent=47 // pred_fallthru
        _
      // Predicated region
      $region57: #{vae_attention_block.3} parent=47 // pred_check
        %p414 = pneg %p117
      $region58: #{vae_attention_block.3} parent=47 // pred_check_branch
        %416 = sbr.rel (%p414) target = $region60
      $region59: #{vae_attention_block.3} parent=47 // pred_region
        %p417 = scmp.lt.s32.totalorder %s25, 1
        %s418 = scalar_select %p417, %s25, 1
        %s419 = smul.addr %s418, 8
        %s420 = smul.addr %s419, 8
        %s421 = scalar_lea.vmem %s2, %s420
      $region60: #{vae_attention_block.3} parent=47 // pred_fallthru
        _
      // Predicated region
      $region61: #{vae_attention_block.3} parent=47 // pred_check
        %p422 = pneg %p143
      $region62: #{vae_attention_block.3} parent=47 // pred_check_branch
        %424 = sbr.rel (%p422) target = $region64
      $region63: #{vae_attention_block.3} parent=47 // pred_region
        %p425 = scmp.lt.s32.totalorder %s25, 1
        %s426 = scalar_select %p425, %s25, 1
        %s427 = smul.addr %s426, 8
        %s428 = smul.addr %s427, 8
        %s429 = scalar_lea.vmem %s3, %s428
      $region64: #{vae_attention_block.3} parent=47 // pred_fallthru
        _
    $region48: #{vae_attention_block.3} parent=5 // pred_fallthru
      _
    %p430 = scmp.le.s32.totalorder 1, %s18
    %p431 = scmp.lt.s32.totalorder %s18, 3
    %p432 = pnand %p430, %p431
    %p433 = pneg %p432
    // Predicated region
    $region65: #{vae_attention_block.3} parent=5 // pred_check
      _
    $region66: #{vae_attention_block.3} parent=5 // pred_check_branch
      %435 = sbr.rel (%p432) target = $region68
    $region67: #{vae_attention_block.3} parent=5 // pred_region
      %s436 = ssub.s32 %s18, 1
      %p437 = scmp.lt.s32.totalorder %s28, 1
      %s438 = scalar_select %p437, %s28, 1
      %p439 = scmp.lt.s32.totalorder %s29, 0
      %s440 = scalar_select %p439, %s29, 0
      %s441 = smul.addr %s438, 8
      %s442 = sadd.s32 %s440, %s441
      %s443 = smul.addr %s442, 8
      %s444 = scalar_lea.vmem %s0, %s443
      %p445 = pneg %p65
      %p446 = pneg %p62
      %p447 = scmp.eq.s32.totalorder %s29, 0
      %s448 = scalar_select %p447, %s30, 0
      %p449 = scmp.lt.s32.totalorder %s28, 1
      %s450 = scalar_select %p449, %s28, 1
      %p451 = scmp.lt.s32.totalorder %s448, 0
      %s452 = scalar_select %p451, %s448, 0
      %s453 = smul.addr %s450, 8
      %s454 = sadd.s32 %s452, %s453
      %s455 = smul.addr %s454, 8
      %s456 = scalar_lea.vmem %s1, %s455
      %p457 = pneg %p97
      %p458 = pneg %p94
      %p459 = scmp.lt.s32.totalorder %s28, 1
      %s460 = scalar_select %p459, %s28, 1
      %s461 = smul.addr %s460, 8
      %s462 = smul.addr %s461, 8
      %s463 = scalar_lea.vmem %s2, %s462
      %p464 = pneg %p123
      %p465 = pneg %p120
      %p466 = scmp.lt.s32.totalorder %s28, 1
      %s467 = scalar_select %p466, %s28, 1
      %s468 = smul.addr %s467, 8
      %s469 = smul.addr %s468, 8
      %s470 = scalar_lea.vmem %s3, %s469
      %p471 = pneg %p149
      %p472 = pneg %p146
      %p473 = pneg %p170
      %p474 = pneg %p167
      %p475 = pneg %p191
      %p476 = pneg %p188
      %p477 = pneg %p212
      %p478 = pneg %p209
      %p479 = pneg %p233
      %p480 = pneg %p230
      %p481 = pneg %p254
      %p482 = pneg %p251
      %p483 = pneg %p275
      %p484 = pneg %p272
      %p485 = pneg %p296
      %p486 = pneg %p293
      %p487 = pneg %p317
      %p488 = pneg %p314
      %p489 = pneg %p345
      %p490 = pneg %p342
      %p491 = scmp.lt.s32.totalorder %s28, 1
      %s492 = scalar_select %p491, %s28, 1
      %p493 = scmp.lt.s32.totalorder %s29, 0
      %s494 = scalar_select %p493, %s29, 0
      %s495 = smul.addr %s492, 8
      %s496 = sadd.s32 %s494, %s495
      %s497 = smul.addr %s496, 8
      %s498 = scalar_lea.vmem %s12, %s497
      %p499 = scmp.lt.s32.totalorder %s28, 1
      %s500 = scalar_select %p499, %s28, 1
      %p501 = scmp.lt.s32.totalorder %s29, 0
      %s502 = scalar_select %p501, %s29, 0
      %s503 = smul.addr %s500, 8
      %s504 = sadd.s32 %s502, %s503
      %s505 = smul.addr %s504, 8
      %s506 = scalar_lea.vmem %s0, %s505
      %p507 = scmp.eq.s32.totalorder %s29, 0
      %s508 = scalar_select %p507, %s30, 0
      %p509 = scmp.lt.s32.totalorder %s28, 1
      %s510 = scalar_select %p509, %s28, 1
      %p511 = scmp.lt.s32.totalorder %s508, 0
      %s512 = scalar_select %p511, %s508, 0
      %s513 = smul.addr %s510, 8
      %s514 = sadd.s32 %s512, %s513
      %s515 = smul.addr %s514, 8
      %s516 = scalar_lea.vmem %s1, %s515
      %p517 = scmp.eq.s32.totalorder %s29, 0
      %s518 = scalar_select %p517, %s30, 0
      %p519 = scmp.lt.s32.totalorder %s28, 1
      %s520 = scalar_select %p519, %s28, 1
      %s521 = smul.addr %s520, 8
      %s522 = smul.addr %s521, 8
      %s523 = scalar_lea.vmem %s2, %s522
      %p524 = scmp.lt.s32.totalorder %s28, 1
      %s525 = scalar_select %p524, %s28, 1
      %s526 = smul.addr %s525, 8
      %s527 = smul.addr %s526, 8
      %s528 = scalar_lea.vmem %s3, %s527
      %p529 = scmp.lt.s32.totalorder %s28, 1
      %s530 = scalar_select %p529, %s28, 1
      %p531 = scmp.lt.s32.totalorder %s29, 0
      %s532 = scalar_select %p531, %s29, 0
      %s533 = smul.addr %s530, 8
      %s534 = sadd.s32 %s532, %s533
      %s535 = smul.addr %s534, 8
      %s536 = scalar_lea.vmem %s12, %s535
      %v538 = vld [vmem:[%s523] sm:$0xff]
      %v539 = vld [vmem:[%s523 + $0x8] sm:$0xff]
      %v540 = vld [vmem:[%s523 + $0x10] sm:$0xff]
      %v541 = vld [vmem:[%s523 + $0x18] sm:$0xff]
      %v542 = vld [vmem:[%s523 + $0x20] sm:$0xff]
      %v543 = vld [vmem:[%s523 + $0x28] sm:$0xff]
      %v544 = vld [vmem:[%s523 + $0x30] sm:$0xff]
      %v545 = vld [vmem:[%s523 + $0x38] sm:$0xff]
      %v546 = vld [vmem:[%s528] sm:$0xff]
      %v547 = vld [vmem:[%s528 + $0x8] sm:$0xff]
      %v548 = vld [vmem:[%s528 + $0x10] sm:$0xff]
      %v549 = vld [vmem:[%s528 + $0x18] sm:$0xff]
      %v550 = vld [vmem:[%s528 + $0x20] sm:$0xff]
      %v551 = vld [vmem:[%s528 + $0x28] sm:$0xff]
      %v552 = vld [vmem:[%s528 + $0x30] sm:$0xff]
      %v553 = vld [vmem:[%s528 + $0x38] sm:$0xff]
      %p554 = scmp.eq.s32.totalorder %s29, 0
      // Predicated region
      $region69: #{vae_attention_block.3} parent=67 // pred_check
        %p555 = pneg %p554
      $region70: #{vae_attention_block.3} parent=67 // pred_check_branch
        %557 = sbr.rel (%p555) target = $region72
      $region71: #{vae_attention_block.3} parent=67 // pred_region
        %v558 = vld [vmem:[%s516] sm:$0xff]
        %v559 = vld [vmem:[%s516 + $0x8] sm:$0xff]
        %v560 = vld [vmem:[%s516 + $0x10] sm:$0xff]
        %v561 = vld [vmem:[%s516 + $0x18] sm:$0xff]
        %v562 = vld [vmem:[%s516 + $0x20] sm:$0xff]
        %v563 = vld [vmem:[%s516 + $0x28] sm:$0xff]
        %v564 = vld [vmem:[%s516 + $0x30] sm:$0xff]
        %v565 = vld [vmem:[%s516 + $0x38] sm:$0xff]
        %567 = vset.pattern.permute.xlu0 0
        %568 = vperm.xlu0 %567, %v538
        %v569 = vpop.permute.xlu0 %568
        %572 = vset.pattern.permute.xlu0 0
        %573 = vperm.xlu0 %572, %v539
        %v574 = vpop.permute.xlu0 %573
        %577 = vset.pattern.permute.xlu0 0
        %578 = vperm.xlu0 %577, %v540
        %v579 = vpop.permute.xlu0 %578
        %582 = vset.pattern.permute.xlu0 0
        %583 = vperm.xlu0 %582, %v541
        %v584 = vpop.permute.xlu0 %583
        %587 = vset.pattern.permute.xlu0 0
        %588 = vperm.xlu0 %587, %v542
        %v589 = vpop.permute.xlu0 %588
        %592 = vset.pattern.permute.xlu0 0
        %593 = vperm.xlu0 %592, %v543
        %v594 = vpop.permute.xlu0 %593
        %597 = vset.pattern.permute.xlu0 0
        %598 = vperm.xlu0 %597, %v544
        %v599 = vpop.permute.xlu0 %598
        %602 = vset.pattern.permute.xlu0 0
        %603 = vperm.xlu0 %602, %v545
        %v604 = vpop.permute.xlu0 %603
        %v606 = vmul.f32 %v558, %v569
        %v607 = vmul.f32 %v559, %v574
        %v608 = vmul.f32 %v560, %v579
        %v609 = vmul.f32 %v561, %v584
        %v610 = vmul.f32 %v562, %v589
        %v611 = vmul.f32 %v563, %v594
        %v612 = vmul.f32 %v564, %v599
        %v613 = vmul.f32 %v565, %v604
        %615 = vset.pattern.permute.xlu0 0
        %616 = vperm.xlu0 %615, %v546
        %v617 = vpop.permute.xlu0 %616
        %620 = vset.pattern.permute.xlu0 0
        %621 = vperm.xlu0 %620, %v547
        %v622 = vpop.permute.xlu0 %621
        %625 = vset.pattern.permute.xlu0 0
        %626 = vperm.xlu0 %625, %v548
        %v627 = vpop.permute.xlu0 %626
        %630 = vset.pattern.permute.xlu0 0
        %631 = vperm.xlu0 %630, %v549
        %v632 = vpop.permute.xlu0 %631
        %635 = vset.pattern.permute.xlu0 0
        %636 = vperm.xlu0 %635, %v550
        %v637 = vpop.permute.xlu0 %636
        %640 = vset.pattern.permute.xlu0 0
        %641 = vperm.xlu0 %640, %v551
        %v642 = vpop.permute.xlu0 %641
        %645 = vset.pattern.permute.xlu0 0
        %646 = vperm.xlu0 %645, %v552
        %v647 = vpop.permute.xlu0 %646
        %650 = vset.pattern.permute.xlu0 0
        %651 = vperm.xlu0 %650, %v553
        %v652 = vpop.permute.xlu0 %651
        %v654 = vadd.f32 %v606, %v617
        %v655 = vadd.f32 %v607, %v622
        %v656 = vadd.f32 %v608, %v627
        %v657 = vadd.f32 %v609, %v632
        %v658 = vadd.f32 %v610, %v637
        %v659 = vadd.f32 %v611, %v642
        %v660 = vadd.f32 %v612, %v647
        %v661 = vadd.f32 %v613, %v652
        %v662 = vpack.c.bf16 %v655, %v654
        %v663 = vpack.c.bf16 %v657, %v656
        %v664 = vpack.c.bf16 %v659, %v658
        %v665 = vpack.c.bf16 %v661, %v660
        %v666 = vld [vmem:[%s6] sm:$0xf]
        %v667 = vld [vmem:[%s6 + $0x4] sm:$0xf]
        %v668 = vld [vmem:[%s6 + $0x8] sm:$0xf]
        %v669 = vld [vmem:[%s6 + $0xc] sm:$0xf]
        %v670 = vld [vmem:[%s6 + $0x10] sm:$0xf]
        %v671 = vld [vmem:[%s6 + $0x14] sm:$0xf]
        %v672 = vld [vmem:[%s6 + $0x18] sm:$0xf]
        %v673 = vld [vmem:[%s6 + $0x1c] sm:$0xf]
        %v674 = vld [vmem:[%s7] sm:$0xff]
        %v675 = vld [vmem:[%s7 + $0x8] sm:$0xff]
        %v676 = vld [vmem:[%s7 + $0x10] sm:$0xff]
        %v677 = vld [vmem:[%s7 + $0x18] sm:$0xff]
        %v678 = vld [vmem:[%s7 + $0x20] sm:$0xff]
        %v679 = vld [vmem:[%s7 + $0x28] sm:$0xff]
        %v680 = vld [vmem:[%s7 + $0x30] sm:$0xff]
        %v681 = vld [vmem:[%s7 + $0x38] sm:$0xff]
        %683 = vset.pattern.permute.xlu0 0
        %684 = vperm.xlu0 %683, %v674
        %v685 = vpop.permute.xlu0 %684
        %688 = vset.pattern.permute.xlu0 0
        %689 = vperm.xlu0 %688, %v675
        %v690 = vpop.permute.xlu0 %689
        %693 = vset.pattern.permute.xlu0 0
        %694 = vperm.xlu0 %693, %v676
        %v695 = vpop.permute.xlu0 %694
        %698 = vset.pattern.permute.xlu0 0
        %699 = vperm.xlu0 %698, %v677
        %v700 = vpop.permute.xlu0 %699
        %703 = vset.pattern.permute.xlu0 0
        %704 = vperm.xlu0 %703, %v678
        %v705 = vpop.permute.xlu0 %704
        %708 = vset.pattern.permute.xlu0 0
        %709 = vperm.xlu0 %708, %v679
        %v710 = vpop.permute.xlu0 %709
        %713 = vset.pattern.permute.xlu0 0
        %714 = vperm.xlu0 %713, %v680
        %v715 = vpop.permute.xlu0 %714
        %718 = vset.pattern.permute.xlu0 0
        %719 = vperm.xlu0 %718, %v681
        %v720 = vpop.permute.xlu0 %719
        %v730 = vunpack.c.l.b16 %v666
        %v731 = vunpack.c.l.b16 %v667
        %v732 = vunpack.c.l.b16 %v668
        %v733 = vunpack.c.l.b16 %v669
        %v734 = vunpack.c.l.b16 %v670
        %v735 = vunpack.c.l.b16 %v671
        %v736 = vunpack.c.l.b16 %v672
        %v737 = vunpack.c.l.b16 %v673
        %v738 = vpack.c.b16 %v731, %v730
        %v739 = vpack.c.b16 %v733, %v732
        %v740 = vpack.c.b16 %v735, %v734
        %v741 = vpack.c.b16 %v737, %v736
        %vm742 = vcmask 523264
        %v744 = vsel %vm742, %v738, 0
        %v747 = vsel %vm742, %v739, 0
        %v750 = vsel %vm742, %v740, 0
        %v753 = vsel %vm742, %v741, 0
        %755 = vmatprep.subr.bf16.mxu0 0
        %756 = vmatpush1.bf16.msra.mxu0 0
        %757 = vmatprep.subr.bf16.mxu0 0
        %758 = vmatpush1.bf16.msra.mxu0 0
        %759 = vmatprep.subr.bf16.mxu0 0
        %760 = vmatpush1.bf16.msra.mxu0 0
        %761 = vmatprep.subr.bf16.mxu0 0
        %762 = vmatpush1.bf16.msra.mxu0 0
        %763 = vmatprep.subr.bf16.mxu0 0
        %764 = vmatpush1.bf16.msra.mxu0 %v665
        %765 = vmatprep.subr.bf16.mxu0 0
        %766 = vmatpush1.bf16.msra.mxu0 %v664
        %767 = vmatprep.subr.bf16.mxu0 0
        %768 = vmatpush1.bf16.msra.mxu0 %v663
        %769 = vmatprep.subr.bf16.mxu0 0
        %770 = vmatpush1.bf16.msra.mxu0 %v662
        %771 = vmatprep.subr.bf16.mxu0 0
        %772 = vmatpush2.bf16.msra.mxu0 0
        %773 = vmatprep.subr.bf16.mxu0 0
        %774 = vmatpush2.bf16.msra.mxu0 0
        %775 = vmatprep.subr.bf16.mxu0 0
        %776 = vmatpush2.bf16.msra.mxu0 0
        %777 = vmatprep.subr.bf16.mxu0 0
        %778 = vmatpush2.bf16.msra.mxu0 0
        %779 = vmatprep.subr.bf16.mxu0 0
        %780 = vmatpush2.bf16.msra.mxu0 0
        %781 = vmatprep.subr.bf16.mxu0 0
        %782 = vmatpush2.bf16.msra.mxu0 0
        %783 = vmatprep.subr.bf16.mxu0 0
        %784 = vmatpush2.bf16.msra.mxu0 0
        %785 = vmatprep.subr.bf16.mxu0 0
        %786 = vmatpush2.bf16.msra.mxu0 0
        %787 = vmatprep.mubr.bf16.mxu0 0
        %788 = vmatmul.mubr.bf16.gmra.mxu0 %v744
        %v789 = vpop.f32.mrf.mxu0
        %v790 = vadd.f32 %v685, %v789
        %v791 = vpop.f32.mrf.mxu0
        %v792 = vpop.f32.mrf.mxu0
        %v793 = vadd.f32 %v690, %v792
        %v794 = vpop.f32.mrf.mxu0
        %795 = vmatprep.mubr.bf16.mxu0 0
        %796 = vmatmul.mubr.bf16.gmra.mxu0 %v747
        %v797 = vpop.f32.mrf.mxu0
        %v798 = vadd.f32 %v695, %v797
        %v799 = vpop.f32.mrf.mxu0
        %v800 = vpop.f32.mrf.mxu0
        %v801 = vadd.f32 %v700, %v800
        %v802 = vpop.f32.mrf.mxu0
        %803 = vmatprep.mubr.bf16.mxu0 0
        %804 = vmatmul.mubr.bf16.gmra.mxu0 %v750
        %v805 = vpop.f32.mrf.mxu0
        %v806 = vadd.f32 %v705, %v805
        %v807 = vpop.f32.mrf.mxu0
        %v808 = vpop.f32.mrf.mxu0
        %v809 = vadd.f32 %v710, %v808
        %v810 = vpop.f32.mrf.mxu0
        %811 = vmatprep.mubr.bf16.mxu0 0
        %812 = vmatmul.mubr.bf16.gmra.mxu0 %v753
        %v813 = vpop.f32.mrf.mxu0
        %v814 = vadd.f32 %v715, %v813
        %v815 = vpop.f32.mrf.mxu0
        %v816 = vpop.f32.mrf.mxu0
        %v817 = vadd.f32 %v720, %v816
        %v818 = vpop.f32.mrf.mxu0
        %819 = vdwg.mxu0
        %v820 = vld [vmem:[%s8] sm:$0xf]
        %v821 = vld [vmem:[%s8 + $0x4] sm:$0xf]
        %v822 = vld [vmem:[%s8 + $0x8] sm:$0xf]
        %v823 = vld [vmem:[%s8 + $0xc] sm:$0xf]
        %v824 = vld [vmem:[%s8 + $0x10] sm:$0xf]
        %v825 = vld [vmem:[%s8 + $0x14] sm:$0xf]
        %v826 = vld [vmem:[%s8 + $0x18] sm:$0xf]
        %v827 = vld [vmem:[%s8 + $0x1c] sm:$0xf]
        %v828 = vld [vmem:[%s9] sm:$0xff]
        %v829 = vld [vmem:[%s9 + $0x8] sm:$0xff]
        %v830 = vld [vmem:[%s9 + $0x10] sm:$0xff]
        %v831 = vld [vmem:[%s9 + $0x18] sm:$0xff]
        %v832 = vld [vmem:[%s9 + $0x20] sm:$0xff]
        %v833 = vld [vmem:[%s9 + $0x28] sm:$0xff]
        %v834 = vld [vmem:[%s9 + $0x30] sm:$0xff]
        %v835 = vld [vmem:[%s9 + $0x38] sm:$0xff]
        %837 = vset.pattern.permute.xlu0 0
        %838 = vperm.xlu0 %837, %v828
        %v839 = vpop.permute.xlu0 %838
        %842 = vset.pattern.permute.xlu0 0
        %843 = vperm.xlu0 %842, %v829
        %v844 = vpop.permute.xlu0 %843
        %847 = vset.pattern.permute.xlu0 0
        %848 = vperm.xlu0 %847, %v830
        %v849 = vpop.permute.xlu0 %848
        %852 = vset.pattern.permute.xlu0 0
        %853 = vperm.xlu0 %852, %v831
        %v854 = vpop.permute.xlu0 %853
        %857 = vset.pattern.permute.xlu0 0
        %858 = vperm.xlu0 %857, %v832
        %v859 = vpop.permute.xlu0 %858
        %862 = vset.pattern.permute.xlu0 0
        %863 = vperm.xlu0 %862, %v833
        %v864 = vpop.permute.xlu0 %863
        %867 = vset.pattern.permute.xlu0 0
        %868 = vperm.xlu0 %867, %v834
        %v869 = vpop.permute.xlu0 %868
        %872 = vset.pattern.permute.xlu0 0
        %873 = vperm.xlu0 %872, %v835
        %v874 = vpop.permute.xlu0 %873
        %v884 = vunpack.c.l.b16 %v820
        %v885 = vunpack.c.l.b16 %v821
        %v886 = vunpack.c.l.b16 %v822
        %v887 = vunpack.c.l.b16 %v823
        %v888 = vunpack.c.l.b16 %v824
        %v889 = vunpack.c.l.b16 %v825
        %v890 = vunpack.c.l.b16 %v826
        %v891 = vunpack.c.l.b16 %v827
        %v892 = vpack.c.b16 %v885, %v884
        %v893 = vpack.c.b16 %v887, %v886
        %v894 = vpack.c.b16 %v889, %v888
        %v895 = vpack.c.b16 %v891, %v890
        %v897 = vsel %vm742, %v892, 0
        %v900 = vsel %vm742, %v893, 0
        %v903 = vsel %vm742, %v894, 0
        %v906 = vsel %vm742, %v895, 0
        %908 = vmatprep.subr.bf16.mxu0 0
        %909 = vmatpush1.bf16.msra.mxu0 0
        %910 = vmatprep.subr.bf16.mxu0 0
        %911 = vmatpush1.bf16.msra.mxu0 0
        %912 = vmatprep.subr.bf16.mxu0 0
        %913 = vmatpush1.bf16.msra.mxu0 0
        %914 = vmatprep.subr.bf16.mxu0 0
        %915 = vmatpush1.bf16.msra.mxu0 0
        %916 = vmatprep.subr.bf16.mxu0 0
        %917 = vmatpush1.bf16.msra.mxu0 %v665
        %918 = vmatprep.subr.bf16.mxu0 0
        %919 = vmatpush1.bf16.msra.mxu0 %v664
        %920 = vmatprep.subr.bf16.mxu0 0
        %921 = vmatpush1.bf16.msra.mxu0 %v663
        %922 = vmatprep.subr.bf16.mxu0 0
        %923 = vmatpush1.bf16.msra.mxu0 %v662
        %924 = vmatprep.subr.bf16.mxu0 0
        %925 = vmatpush2.bf16.msra.mxu0 0
        %926 = vmatprep.subr.bf16.mxu0 0
        %927 = vmatpush2.bf16.msra.mxu0 0
        %928 = vmatprep.subr.bf16.mxu0 0
        %929 = vmatpush2.bf16.msra.mxu0 0
        %930 = vmatprep.subr.bf16.mxu0 0
        %931 = vmatpush2.bf16.msra.mxu0 0
        %932 = vmatprep.subr.bf16.mxu0 0
        %933 = vmatpush2.bf16.msra.mxu0 0
        %934 = vmatprep.subr.bf16.mxu0 0
        %935 = vmatpush2.bf16.msra.mxu0 0
        %936 = vmatprep.subr.bf16.mxu0 0
        %937 = vmatpush2.bf16.msra.mxu0 0
        %938 = vmatprep.subr.bf16.mxu0 0
        %939 = vmatpush2.bf16.msra.mxu0 0
        %940 = vmatprep.mubr.bf16.mxu0 0
        %941 = vmatmul.mubr.bf16.gmra.mxu0 %v897
        %v942 = vpop.f32.mrf.mxu0
        %v943 = vadd.f32 %v839, %v942
        %v944 = vpop.f32.mrf.mxu0
        %v945 = vpop.f32.mrf.mxu0
        %v946 = vadd.f32 %v844, %v945
        %v947 = vpop.f32.mrf.mxu0
        %948 = vmatprep.mubr.bf16.mxu0 0
        %949 = vmatmul.mubr.bf16.gmra.mxu0 %v900
        %v950 = vpop.f32.mrf.mxu0
        %v951 = vadd.f32 %v849, %v950
        %v952 = vpop.f32.mrf.mxu0
        %v953 = vpop.f32.mrf.mxu0
        %v954 = vadd.f32 %v854, %v953
        %v955 = vpop.f32.mrf.mxu0
        %956 = vmatprep.mubr.bf16.mxu0 0
        %957 = vmatmul.mubr.bf16.gmra.mxu0 %v903
        %v958 = vpop.f32.mrf.mxu0
        %v959 = vadd.f32 %v859, %v958
        %v960 = vpop.f32.mrf.mxu0
        %v961 = vpop.f32.mrf.mxu0
        %v962 = vadd.f32 %v864, %v961
        %v963 = vpop.f32.mrf.mxu0
        %964 = vmatprep.mubr.bf16.mxu0 0
        %965 = vmatmul.mubr.bf16.gmra.mxu0 %v906
        %v966 = vpop.f32.mrf.mxu0
        %v967 = vadd.f32 %v869, %v966
        %v968 = vpop.f32.mrf.mxu0
        %v969 = vpop.f32.mrf.mxu0
        %v970 = vadd.f32 %v874, %v969
        %v971 = vpop.f32.mrf.mxu0
        %972 = vdwg.mxu0
        %v973 = vpack.c.bf16 %v793, %v790
        %v974 = vpack.c.bf16 %v801, %v798
        %v975 = vpack.c.bf16 %v809, %v806
        %v976 = vpack.c.bf16 %v817, %v814
        %v981 = vunpack.c.l.b16 %v973
        %v982 = vunpack.c.h.b16 %v973
        %v983 = vunpack.c.l.b16 %v974
        %v984 = vunpack.c.h.b16 %v974
        %v985 = vunpack.c.l.b16 %v975
        %v986 = vunpack.c.h.b16 %v975
        %v987 = vunpack.c.l.b16 %v976
        %v988 = vunpack.c.h.b16 %v976
        %v989 = vpack.c.b16 %v981, %v981
        %v990 = vpack.c.b16 %v982, %v982
        %v991 = vpack.c.b16 %v983, %v983
        %v992 = vpack.c.b16 %v984, %v984
        %v993 = vpack.c.b16 %v985, %v985
        %v994 = vpack.c.b16 %v986, %v986
        %v995 = vpack.c.b16 %v987, %v987
        %v996 = vpack.c.b16 %v988, %v988
        %s1005 = smul.u32 %s30, 8
        %s1006 = smul.addr %s1005, 4
        %s1007 = scalar_lea.vmem [#allocation2], %s1006
        %vm1008 = vcmask 519168
        %1009 = vst.msk [vmem:[%s1007] sm:$0xf] %vm1008, %v989
        %1010 = vst.msk [vmem:[%s1007 + $0x4] sm:$0xf] %vm1008, %v990
        %1011 = vst.msk [vmem:[%s1007 + $0x8] sm:$0xf] %vm1008, %v991
        %1012 = vst.msk [vmem:[%s1007 + $0xc] sm:$0xf] %vm1008, %v992
        %1013 = vst.msk [vmem:[%s1007 + $0x10] sm:$0xf] %vm1008, %v993
        %1014 = vst.msk [vmem:[%s1007 + $0x14] sm:$0xf] %vm1008, %v994
        %1015 = vst.msk [vmem:[%s1007 + $0x18] sm:$0xf] %vm1008, %v995
        %1016 = vst.msk [vmem:[%s1007 + $0x1c] sm:$0xf] %vm1008, %v996
        %v1017 = vpack.c.bf16 %v946, %v943
        %v1018 = vpack.c.bf16 %v954, %v951
        %v1019 = vpack.c.bf16 %v962, %v959
        %v1020 = vpack.c.bf16 %v970, %v967
        %v1025 = vunpack.c.l.b16 %v1017
        %v1026 = vunpack.c.h.b16 %v1017
        %v1027 = vunpack.c.l.b16 %v1018
        %v1028 = vunpack.c.h.b16 %v1018
        %v1029 = vunpack.c.l.b16 %v1019
        %v1030 = vunpack.c.h.b16 %v1019
        %v1031 = vunpack.c.l.b16 %v1020
        %v1032 = vunpack.c.h.b16 %v1020
        %v1033 = vpack.c.b16 %v1025, %v1025
        %v1034 = vpack.c.b16 %v1026, %v1026
        %v1035 = vpack.c.b16 %v1027, %v1027
        %v1036 = vpack.c.b16 %v1028, %v1028
        %v1037 = vpack.c.b16 %v1029, %v1029
        %v1038 = vpack.c.b16 %v1030, %v1030
        %v1039 = vpack.c.b16 %v1031, %v1031
        %v1040 = vpack.c.b16 %v1032, %v1032
        %s1049 = smul.addr %s1005, 4
        %s1050 = scalar_lea.vmem [#allocation3], %s1049
        %1051 = vst.msk [vmem:[%s1050] sm:$0xf] %vm1008, %v1033
        %1052 = vst.msk [vmem:[%s1050 + $0x4] sm:$0xf] %vm1008, %v1034
        %1053 = vst.msk [vmem:[%s1050 + $0x8] sm:$0xf] %vm1008, %v1035
        %1054 = vst.msk [vmem:[%s1050 + $0xc] sm:$0xf] %vm1008, %v1036
        %1055 = vst.msk [vmem:[%s1050 + $0x10] sm:$0xf] %vm1008, %v1037
        %1056 = vst.msk [vmem:[%s1050 + $0x14] sm:$0xf] %vm1008, %v1038
        %1057 = vst.msk [vmem:[%s1050 + $0x18] sm:$0xf] %vm1008, %v1039
        %1058 = vst.msk [vmem:[%s1050 + $0x1c] sm:$0xf] %vm1008, %v1040
      $region72: #{vae_attention_block.3} parent=67 // pred_fallthru
        _
      %p1059 = scmp.eq.s32.totalorder %s30, 0
      // Predicated region
      $region73: #{vae_attention_block.3} parent=67 // pred_check
        %p1060 = pneg %p1059
      $region74: #{vae_attention_block.3} parent=67 // pred_check_branch
        %1062 = sbr.rel (%p1060) target = $region76
      $region75: #{vae_attention_block.3} parent=67 // pred_region
        %vm1063 = vcmask 7168
        %1064 = vst.msk [vmem:[#allocation5] sm:$0xff] %vm1063, -inf
        %1065 = vst.msk [vmem:[#allocation5 + $0x8] sm:$0xff] %vm1063, -inf
        %1066 = vst.msk [vmem:[#allocation5 + $0x10] sm:$0xff] %vm1063, -inf
        %1067 = vst.msk [vmem:[#allocation5 + $0x18] sm:$0xff] %vm1063, -inf
        %1068 = vst.msk [vmem:[#allocation5 + $0x20] sm:$0xff] %vm1063, -inf
        %1069 = vst.msk [vmem:[#allocation5 + $0x28] sm:$0xff] %vm1063, -inf
        %1070 = vst.msk [vmem:[#allocation5 + $0x30] sm:$0xff] %vm1063, -inf
        %1071 = vst.msk [vmem:[#allocation5 + $0x38] sm:$0xff] %vm1063, -inf
        %1072 = vst.msk [vmem:[#allocation6] sm:$0xff] %vm1063, 0.0
        %1073 = vst.msk [vmem:[#allocation6 + $0x8] sm:$0xff] %vm1063, 0.0
        %1074 = vst.msk [vmem:[#allocation6 + $0x10] sm:$0xff] %vm1063, 0.0
        %1075 = vst.msk [vmem:[#allocation6 + $0x18] sm:$0xff] %vm1063, 0.0
        %1076 = vst.msk [vmem:[#allocation6 + $0x20] sm:$0xff] %vm1063, 0.0
        %1077 = vst.msk [vmem:[#allocation6 + $0x28] sm:$0xff] %vm1063, 0.0
        %1078 = vst.msk [vmem:[#allocation6 + $0x30] sm:$0xff] %vm1063, 0.0
        %1079 = vst.msk [vmem:[#allocation6 + $0x38] sm:$0xff] %vm1063, 0.0
        %vm1080 = vcmask 523264
        %1081 = vst.msk [vmem:[#allocation7] sm:$0xff] %vm1080, 0.0
        %1082 = vst.msk [vmem:[#allocation7 + $0x8] sm:$0xff] %vm1080, 0.0
        %1083 = vst.msk [vmem:[#allocation7 + $0x10] sm:$0xff] %vm1080, 0.0
        %1084 = vst.msk [vmem:[#allocation7 + $0x18] sm:$0xff] %vm1080, 0.0
        %1085 = vst.msk [vmem:[#allocation7 + $0x20] sm:$0xff] %vm1080, 0.0
        %1086 = vst.msk [vmem:[#allocation7 + $0x28] sm:$0xff] %vm1080, 0.0
        %1087 = vst.msk [vmem:[#allocation7 + $0x30] sm:$0xff] %vm1080, 0.0
        %1088 = vst.msk [vmem:[#allocation7 + $0x38] sm:$0xff] %vm1080, 0.0
        %v1089 = vld [vmem:[%s506] sm:$0xff]
        %v1090 = vld [vmem:[%s506 + $0x8] sm:$0xff]
        %v1091 = vld [vmem:[%s506 + $0x10] sm:$0xff]
        %v1092 = vld [vmem:[%s506 + $0x18] sm:$0xff]
        %v1093 = vld [vmem:[%s506 + $0x20] sm:$0xff]
        %v1094 = vld [vmem:[%s506 + $0x28] sm:$0xff]
        %v1095 = vld [vmem:[%s506 + $0x30] sm:$0xff]
        %v1096 = vld [vmem:[%s506 + $0x38] sm:$0xff]
        %1098 = vset.pattern.permute.xlu0 0
        %1099 = vperm.xlu0 %1098, %v538
        %v1100 = vpop.permute.xlu0 %1099
        %1103 = vset.pattern.permute.xlu0 0
        %1104 = vperm.xlu0 %1103, %v539
        %v1105 = vpop.permute.xlu0 %1104
        %1108 = vset.pattern.permute.xlu0 0
        %1109 = vperm.xlu0 %1108, %v540
        %v1110 = vpop.permute.xlu0 %1109
        %1113 = vset.pattern.permute.xlu0 0
        %1114 = vperm.xlu0 %1113, %v541
        %v1115 = vpop.permute.xlu0 %1114
        %1118 = vset.pattern.permute.xlu0 0
        %1119 = vperm.xlu0 %1118, %v542
        %v1120 = vpop.permute.xlu0 %1119
        %1123 = vset.pattern.permute.xlu0 0
        %1124 = vperm.xlu0 %1123, %v543
        %v1125 = vpop.permute.xlu0 %1124
        %1128 = vset.pattern.permute.xlu0 0
        %1129 = vperm.xlu0 %1128, %v544
        %v1130 = vpop.permute.xlu0 %1129
        %1133 = vset.pattern.permute.xlu0 0
        %1134 = vperm.xlu0 %1133, %v545
        %v1135 = vpop.permute.xlu0 %1134
        %v1137 = vmul.f32 %v1089, %v1100
        %v1138 = vmul.f32 %v1090, %v1105
        %v1139 = vmul.f32 %v1091, %v1110
        %v1140 = vmul.f32 %v1092, %v1115
        %v1141 = vmul.f32 %v1093, %v1120
        %v1142 = vmul.f32 %v1094, %v1125
        %v1143 = vmul.f32 %v1095, %v1130
        %v1144 = vmul.f32 %v1096, %v1135
        %1146 = vset.pattern.permute.xlu0 0
        %1147 = vperm.xlu0 %1146, %v546
        %v1148 = vpop.permute.xlu0 %1147
        %1151 = vset.pattern.permute.xlu0 0
        %1152 = vperm.xlu0 %1151, %v547
        %v1153 = vpop.permute.xlu0 %1152
        %1156 = vset.pattern.permute.xlu0 0
        %1157 = vperm.xlu0 %1156, %v548
        %v1158 = vpop.permute.xlu0 %1157
        %1161 = vset.pattern.permute.xlu0 0
        %1162 = vperm.xlu0 %1161, %v549
        %v1163 = vpop.permute.xlu0 %1162
        %1166 = vset.pattern.permute.xlu0 0
        %1167 = vperm.xlu0 %1166, %v550
        %v1168 = vpop.permute.xlu0 %1167
        %1171 = vset.pattern.permute.xlu0 0
        %1172 = vperm.xlu0 %1171, %v551
        %v1173 = vpop.permute.xlu0 %1172
        %1176 = vset.pattern.permute.xlu0 0
        %1177 = vperm.xlu0 %1176, %v552
        %v1178 = vpop.permute.xlu0 %1177
        %1181 = vset.pattern.permute.xlu0 0
        %1182 = vperm.xlu0 %1181, %v553
        %v1183 = vpop.permute.xlu0 %1182
        %v1185 = vadd.f32 %v1137, %v1148
        %v1186 = vadd.f32 %v1138, %v1153
        %v1187 = vadd.f32 %v1139, %v1158
        %v1188 = vadd.f32 %v1140, %v1163
        %v1189 = vadd.f32 %v1141, %v1168
        %v1190 = vadd.f32 %v1142, %v1173
        %v1191 = vadd.f32 %v1143, %v1178
        %v1192 = vadd.f32 %v1144, %v1183
        %v1193 = vpack.c.bf16 %v1186, %v1185
        %v1194 = vpack.c.bf16 %v1188, %v1187
        %v1195 = vpack.c.bf16 %v1190, %v1189
        %v1196 = vpack.c.bf16 %v1192, %v1191
        %v1197 = vld [vmem:[%s4] sm:$0xf]
        %v1198 = vld [vmem:[%s4 + $0x4] sm:$0xf]
        %v1199 = vld [vmem:[%s4 + $0x8] sm:$0xf]
        %v1200 = vld [vmem:[%s4 + $0xc] sm:$0xf]
        %v1201 = vld [vmem:[%s4 + $0x10] sm:$0xf]
        %v1202 = vld [vmem:[%s4 + $0x14] sm:$0xf]
        %v1203 = vld [vmem:[%s4 + $0x18] sm:$0xf]
        %v1204 = vld [vmem:[%s4 + $0x1c] sm:$0xf]
        %v1205 = vld [vmem:[%s5] sm:$0xff]
        %v1206 = vld [vmem:[%s5 + $0x8] sm:$0xff]
        %v1207 = vld [vmem:[%s5 + $0x10] sm:$0xff]
        %v1208 = vld [vmem:[%s5 + $0x18] sm:$0xff]
        %v1209 = vld [vmem:[%s5 + $0x20] sm:$0xff]
        %v1210 = vld [vmem:[%s5 + $0x28] sm:$0xff]
        %v1211 = vld [vmem:[%s5 + $0x30] sm:$0xff]
        %v1212 = vld [vmem:[%s5 + $0x38] sm:$0xff]
        %1214 = vset.pattern.permute.xlu0 0
        %1215 = vperm.xlu0 %1214, %v1205
        %v1216 = vpop.permute.xlu0 %1215
        %1219 = vset.pattern.permute.xlu0 0
        %1220 = vperm.xlu0 %1219, %v1206
        %v1221 = vpop.permute.xlu0 %1220
        %1224 = vset.pattern.permute.xlu0 0
        %1225 = vperm.xlu0 %1224, %v1207
        %v1226 = vpop.permute.xlu0 %1225
        %1229 = vset.pattern.permute.xlu0 0
        %1230 = vperm.xlu0 %1229, %v1208
        %v1231 = vpop.permute.xlu0 %1230
        %1234 = vset.pattern.permute.xlu0 0
        %1235 = vperm.xlu0 %1234, %v1209
        %v1236 = vpop.permute.xlu0 %1235
        %1239 = vset.pattern.permute.xlu0 0
        %1240 = vperm.xlu0 %1239, %v1210
        %v1241 = vpop.permute.xlu0 %1240
        %1244 = vset.pattern.permute.xlu0 0
        %1245 = vperm.xlu0 %1244, %v1211
        %v1246 = vpop.permute.xlu0 %1245
        %1249 = vset.pattern.permute.xlu0 0
        %1250 = vperm.xlu0 %1249, %v1212
        %v1251 = vpop.permute.xlu0 %1250
        %v1261 = vunpack.c.l.b16 %v1197
        %v1262 = vunpack.c.l.b16 %v1198
        %v1263 = vunpack.c.l.b16 %v1199
        %v1264 = vunpack.c.l.b16 %v1200
        %v1265 = vunpack.c.l.b16 %v1201
        %v1266 = vunpack.c.l.b16 %v1202
        %v1267 = vunpack.c.l.b16 %v1203
        %v1268 = vunpack.c.l.b16 %v1204
        %v1269 = vpack.c.b16 %v1262, %v1261
        %v1270 = vpack.c.b16 %v1264, %v1263
        %v1271 = vpack.c.b16 %v1266, %v1265
        %v1272 = vpack.c.b16 %v1268, %v1267
        %v1274 = vsel %vm1080, %v1269, 0
        %v1277 = vsel %vm1080, %v1270, 0
        %v1280 = vsel %vm1080, %v1271, 0
        %v1283 = vsel %vm1080, %v1272, 0
        %1285 = vmatprep.subr.bf16.mxu0 0
        %1286 = vmatpush1.bf16.msra.mxu0 0
        %1287 = vmatprep.subr.bf16.mxu0 0
        %1288 = vmatpush1.bf16.msra.mxu0 0
        %1289 = vmatprep.subr.bf16.mxu0 0
        %1290 = vmatpush1.bf16.msra.mxu0 0
        %1291 = vmatprep.subr.bf16.mxu0 0
        %1292 = vmatpush1.bf16.msra.mxu0 0
        %1293 = vmatprep.subr.bf16.mxu0 0
        %1294 = vmatpush1.bf16.msra.mxu0 %v1196
        %1295 = vmatprep.subr.bf16.mxu0 0
        %1296 = vmatpush1.bf16.msra.mxu0 %v1195
        %1297 = vmatprep.subr.bf16.mxu0 0
        %1298 = vmatpush1.bf16.msra.mxu0 %v1194
        %1299 = vmatprep.subr.bf16.mxu0 0
        %1300 = vmatpush1.bf16.msra.mxu0 %v1193
        %1301 = vmatprep.subr.bf16.mxu0 0
        %1302 = vmatpush2.bf16.msra.mxu0 0
        %1303 = vmatprep.subr.bf16.mxu0 0
        %1304 = vmatpush2.bf16.msra.mxu0 0
        %1305 = vmatprep.subr.bf16.mxu0 0
        %1306 = vmatpush2.bf16.msra.mxu0 0
        %1307 = vmatprep.subr.bf16.mxu0 0
        %1308 = vmatpush2.bf16.msra.mxu0 0
        %1309 = vmatprep.subr.bf16.mxu0 0
        %1310 = vmatpush2.bf16.msra.mxu0 0
        %1311 = vmatprep.subr.bf16.mxu0 0
        %1312 = vmatpush2.bf16.msra.mxu0 0
        %1313 = vmatprep.subr.bf16.mxu0 0
        %1314 = vmatpush2.bf16.msra.mxu0 0
        %1315 = vmatprep.subr.bf16.mxu0 0
        %1316 = vmatpush2.bf16.msra.mxu0 0
        %1317 = vmatprep.mubr.bf16.mxu0 0
        %1318 = vmatmul.mubr.bf16.gmra.mxu0 %v1274
        %v1319 = vpop.f32.mrf.mxu0
        %v1320 = vadd.f32 %v1216, %v1319
        %v1321 = vpop.f32.mrf.mxu0
        %v1322 = vpop.f32.mrf.mxu0
        %v1323 = vadd.f32 %v1221, %v1322
        %v1324 = vpop.f32.mrf.mxu0
        %1325 = vmatprep.mubr.bf16.mxu0 0
        %1326 = vmatmul.mubr.bf16.gmra.mxu0 %v1277
        %v1327 = vpop.f32.mrf.mxu0
        %v1328 = vadd.f32 %v1226, %v1327
        %v1329 = vpop.f32.mrf.mxu0
        %v1330 = vpop.f32.mrf.mxu0
        %v1331 = vadd.f32 %v1231, %v1330
        %v1332 = vpop.f32.mrf.mxu0
        %1333 = vmatprep.mubr.bf16.mxu0 0
        %1334 = vmatmul.mubr.bf16.gmra.mxu0 %v1280
        %v1335 = vpop.f32.mrf.mxu0
        %v1336 = vadd.f32 %v1236, %v1335
        %v1337 = vpop.f32.mrf.mxu0
        %v1338 = vpop.f32.mrf.mxu0
        %v1339 = vadd.f32 %v1241, %v1338
        %v1340 = vpop.f32.mrf.mxu0
        %1341 = vmatprep.mubr.bf16.mxu0 0
        %1342 = vmatmul.mubr.bf16.gmra.mxu0 %v1283
        %v1343 = vpop.f32.mrf.mxu0
        %v1344 = vadd.f32 %v1246, %v1343
        %v1345 = vpop.f32.mrf.mxu0
        %v1346 = vpop.f32.mrf.mxu0
        %v1347 = vadd.f32 %v1251, %v1346
        %v1348 = vpop.f32.mrf.mxu0
        %1349 = vdwg.mxu0
        %1350 = vxpose.xlu0.b32.start [1/16] %v1320, 128
        %1351 = vxpose.xlu0.b32.cont [2/16] %v1323, 128
        %1352 = vxpose.xlu0.b32.cont [3/16] %v1328, 128
        %1353 = vxpose.xlu0.b32.cont [4/16] %v1331, 128
        %1354 = vxpose.xlu0.b32.cont [5/16] %v1336, 128
        %1355 = vxpose.xlu0.b32.cont [6/16] %v1339, 128
        %1356 = vxpose.xlu0.b32.cont [7/16] %v1344, 128
        %1357 = vxpose.xlu0.b32.cont [8/16] %v1347, 128
        %1358 = vxpose.xlu0.b32.cont [9/16] 0.0, 128
        %1359 = vxpose.xlu0.b32.cont [10/16] 0.0, 128
        %1360 = vxpose.xlu0.b32.cont [11/16] 0.0, 128
        %1361 = vxpose.xlu0.b32.cont [12/16] 0.0, 128
        %1362 = vxpose.xlu0.b32.cont [13/16] 0.0, 128
        %1363 = vxpose.xlu0.b32.cont [14/16] 0.0, 128
        %1364 = vxpose.xlu0.b32.cont [15/16] 0.0, 128
        %1365 = vxpose.xlu0.b32.end [16/16] 0.0, 128
        %v1366 = vpop.trf.xlu0
        %v1367 = vpop.trf.xlu0
        %v1368 = vpop.trf.xlu0
        %v1369 = vpop.trf.xlu0
        %v1370 = vpop.trf.xlu0
        %v1371 = vpop.trf.xlu0
        %v1372 = vpop.trf.xlu0
        %v1373 = vpop.trf.xlu0
        %v1374 = vpop.trf.xlu0
        %v1375 = vpop.trf.xlu0
        %v1376 = vpop.trf.xlu0
        %v1377 = vpop.trf.xlu0
        %v1378 = vpop.trf.xlu0
        %v1379 = vpop.trf.xlu0
        %v1380 = vpop.trf.xlu0
        %v1381 = vpop.trf.xlu0
        %v1382 = vpack.c.bf16 %v1367, %v1366
        %v1383 = vpack.c.bf16 %v1369, %v1368
        %v1384 = vpack.c.bf16 %v1371, %v1370
        %v1385 = vpack.c.bf16 %v1373, %v1372
        %v1390 = vunpack.c.l.b16 %v1382
        %v1391 = vunpack.c.h.b16 %v1382
        %v1392 = vunpack.c.l.b16 %v1383
        %v1393 = vunpack.c.h.b16 %v1383
        %v1394 = vunpack.c.l.b16 %v1384
        %v1395 = vunpack.c.h.b16 %v1384
        %v1396 = vunpack.c.l.b16 %v1385
        %v1397 = vunpack.c.h.b16 %v1385
        %v1398 = vpack.c.b16 %v1390, %v1390
        %v1399 = vpack.c.b16 %v1391, %v1391
        %v1400 = vpack.c.b16 %v1392, %v1392
        %v1401 = vpack.c.b16 %v1393, %v1393
        %v1402 = vpack.c.b16 %v1394, %v1394
        %v1403 = vpack.c.b16 %v1395, %v1395
        %v1404 = vpack.c.b16 %v1396, %v1396
        %v1405 = vpack.c.b16 %v1397, %v1397
        %vm1414 = vcmask 519168
        %1415 = vst.msk [vmem:[#allocation4] sm:$0xf] %vm1414, %v1398
        %1416 = vst.msk [vmem:[#allocation4 + $0x4] sm:$0xf] %vm1414, %v1399
        %1417 = vst.msk [vmem:[#allocation4 + $0x8] sm:$0xf] %vm1414, %v1400
        %1418 = vst.msk [vmem:[#allocation4 + $0xc] sm:$0xf] %vm1414, %v1401
        %1419 = vst.msk [vmem:[#allocation4 + $0x10] sm:$0xf] %vm1414, %v1402
        %1420 = vst.msk [vmem:[#allocation4 + $0x14] sm:$0xf] %vm1414, %v1403
        %1421 = vst.msk [vmem:[#allocation4 + $0x18] sm:$0xf] %vm1414, %v1404
        %1422 = vst.msk [vmem:[#allocation4 + $0x1c] sm:$0xf] %vm1414, %v1405
      $region76: #{vae_attention_block.3} parent=67 // pred_fallthru
        _
      %s1423 = smul.u32 %s30, 8
      %s1424 = smul.addr %s1423, 4
      %s1425 = scalar_lea.vmem [#allocation2], %s1424
      %v1426 = vld [vmem:[%s1425] sm:$0xf]
      %v1427 = vld [vmem:[%s1425 + $0x4] sm:$0xf]
      %v1428 = vld [vmem:[%s1425 + $0x8] sm:$0xf]
      %v1429 = vld [vmem:[%s1425 + $0xc] sm:$0xf]
      %v1430 = vld [vmem:[%s1425 + $0x10] sm:$0xf]
      %v1431 = vld [vmem:[%s1425 + $0x14] sm:$0xf]
      %v1432 = vld [vmem:[%s1425 + $0x18] sm:$0xf]
      %v1433 = vld [vmem:[%s1425 + $0x1c] sm:$0xf]
      %s1434 = smul.addr %s1423, 4
      %s1435 = scalar_lea.vmem [#allocation3], %s1434
      %v1436 = vld [vmem:[%s1435] sm:$0xf]
      %v1437 = vld [vmem:[%s1435 + $0x4] sm:$0xf]
      %v1438 = vld [vmem:[%s1435 + $0x8] sm:$0xf]
      %v1439 = vld [vmem:[%s1435 + $0xc] sm:$0xf]
      %v1440 = vld [vmem:[%s1435 + $0x10] sm:$0xf]
      %v1441 = vld [vmem:[%s1435 + $0x14] sm:$0xf]
      %v1442 = vld [vmem:[%s1435 + $0x18] sm:$0xf]
      %v1443 = vld [vmem:[%s1435 + $0x1c] sm:$0xf]
      %v1444 = vld [vmem:[#allocation4] sm:$0xf]
      %v1445 = vld [vmem:[#allocation4 + $0x4] sm:$0xf]
      %v1446 = vld [vmem:[#allocation4 + $0x8] sm:$0xf]
      %v1447 = vld [vmem:[#allocation4 + $0xc] sm:$0xf]
      %v1448 = vld [vmem:[#allocation4 + $0x10] sm:$0xf]
      %v1449 = vld [vmem:[#allocation4 + $0x14] sm:$0xf]
      %v1450 = vld [vmem:[#allocation4 + $0x18] sm:$0xf]
      %v1451 = vld [vmem:[#allocation4 + $0x1c] sm:$0xf]
      %v1460 = vunpack.c.l.b16 %v1444
      %v1461 = vunpack.c.l.b16 %v1445
      %v1462 = vunpack.c.l.b16 %v1446
      %v1463 = vunpack.c.l.b16 %v1447
      %v1464 = vunpack.c.l.b16 %v1448
      %v1465 = vunpack.c.l.b16 %v1449
      %v1466 = vunpack.c.l.b16 %v1450
      %v1467 = vunpack.c.l.b16 %v1451
      %v1468 = vpack.c.b16 %v1461, %v1460
      %v1469 = vpack.c.b16 %v1463, %v1462
      %v1470 = vpack.c.b16 %v1465, %v1464
      %v1471 = vpack.c.b16 %v1467, %v1466
      %v1480 = vunpack.c.l.b16 %v1426
      %v1481 = vunpack.c.l.b16 %v1427
      %v1482 = vunpack.c.l.b16 %v1428
      %v1483 = vunpack.c.l.b16 %v1429
      %v1484 = vunpack.c.l.b16 %v1430
      %v1485 = vunpack.c.l.b16 %v1431
      %v1486 = vunpack.c.l.b16 %v1432
      %v1487 = vunpack.c.l.b16 %v1433
      %v1488 = vpack.c.b16 %v1481, %v1480
      %v1489 = vpack.c.b16 %v1483, %v1482
      %v1490 = vpack.c.b16 %v1485, %v1484
      %v1491 = vpack.c.b16 %v1487, %v1486
      %vm1496 = vcmask 523264
      %v1498 = vsel %vm1496, %v1468, 0
      %v1501 = vsel %vm1496, %v1469, 0
      %v1504 = vsel %vm1496, %v1470, 0
      %v1507 = vsel %vm1496, %v1471, 0
      %1509 = vmatprep.subr.bf16.mxu0 0
      %1510 = vmatpush1.bf16.msra.mxu0 0
      %1511 = vmatprep.subr.bf16.mxu0 0
      %1512 = vmatpush1.bf16.msra.mxu0 0
      %1513 = vmatprep.subr.bf16.mxu0 0
      %1514 = vmatpush1.bf16.msra.mxu0 0
      %1515 = vmatprep.subr.bf16.mxu0 0
      %1516 = vmatpush1.bf16.msra.mxu0 0
      %1517 = vmatprep.subr.bf16.mxu0 0
      %1518 = vmatpush1.bf16.msra.mxu0 %v1491
      %1519 = vmatprep.subr.bf16.mxu0 0
      %1520 = vmatpush1.bf16.msra.mxu0 %v1490
      %1521 = vmatprep.subr.bf16.mxu0 0
      %1522 = vmatpush1.bf16.msra.mxu0 %v1489
      %1523 = vmatprep.subr.bf16.mxu0 0
      %1524 = vmatpush1.bf16.msra.mxu0 %v1488
      %1525 = vmatprep.subr.bf16.mxu0 0
      %1526 = vmatpush2.bf16.msra.mxu0 0
      %1527 = vmatprep.subr.bf16.mxu0 0
      %1528 = vmatpush2.bf16.msra.mxu0 0
      %1529 = vmatprep.subr.bf16.mxu0 0
      %1530 = vmatpush2.bf16.msra.mxu0 0
      %1531 = vmatprep.subr.bf16.mxu0 0
      %1532 = vmatpush2.bf16.msra.mxu0 0
      %1533 = vmatprep.subr.bf16.mxu0 0
      %1534 = vmatpush2.bf16.msra.mxu0 0
      %1535 = vmatprep.subr.bf16.mxu0 0
      %1536 = vmatpush2.bf16.msra.mxu0 0
      %1537 = vmatprep.subr.bf16.mxu0 0
      %1538 = vmatpush2.bf16.msra.mxu0 0
      %1539 = vmatprep.subr.bf16.mxu0 0
      %1540 = vmatpush2.bf16.msra.mxu0 0
      %1541 = vmatprep.mubr.bf16.mxu0 0
      %1542 = vmatmul.mubr.bf16.gmra.mxu0 %v1498
      %v1543 = vpop.f32.mrf.mxu0
      %v1544 = vadd.f32 0.0, %v1543
      %v1545 = vpop.f32.mrf.mxu0
      %v1546 = vpop.f32.mrf.mxu0
      %v1547 = vadd.f32 0.0, %v1546
      %v1548 = vpop.f32.mrf.mxu0
      %1549 = vmatprep.mubr.bf16.mxu0 0
      %1550 = vmatmul.mubr.bf16.gmra.mxu0 %v1501
      %v1551 = vpop.f32.mrf.mxu0
      %v1552 = vadd.f32 0.0, %v1551
      %v1553 = vpop.f32.mrf.mxu0
      %v1554 = vpop.f32.mrf.mxu0
      %v1555 = vadd.f32 0.0, %v1554
      %v1556 = vpop.f32.mrf.mxu0
      %1557 = vmatprep.mubr.bf16.mxu0 0
      %1558 = vmatmul.mubr.bf16.gmra.mxu0 %v1504
      %v1559 = vpop.f32.mrf.mxu0
      %v1560 = vadd.f32 0.0, %v1559
      %v1561 = vpop.f32.mrf.mxu0
      %v1562 = vpop.f32.mrf.mxu0
      %v1563 = vadd.f32 0.0, %v1562
      %v1564 = vpop.f32.mrf.mxu0
      %1565 = vmatprep.mubr.bf16.mxu0 0
      %1566 = vmatmul.mubr.bf16.gmra.mxu0 %v1507
      %v1567 = vpop.f32.mrf.mxu0
      %v1568 = vadd.f32 0.0, %v1567
      %v1569 = vpop.f32.mrf.mxu0
      %v1570 = vpop.f32.mrf.mxu0
      %v1571 = vadd.f32 0.0, %v1570
      %v1572 = vpop.f32.mrf.mxu0
      %1573 = vdwg.mxu0
      %v1574 = vld [vmem:[#allocation5] sm:$0xff]
      %v1575 = vld [vmem:[#allocation5 + $0x8] sm:$0xff]
      %v1576 = vld [vmem:[#allocation5 + $0x10] sm:$0xff]
      %v1577 = vld [vmem:[#allocation5 + $0x18] sm:$0xff]
      %v1578 = vld [vmem:[#allocation5 + $0x20] sm:$0xff]
      %v1579 = vld [vmem:[#allocation5 + $0x28] sm:$0xff]
      %v1580 = vld [vmem:[#allocation5 + $0x30] sm:$0xff]
      %v1581 = vld [vmem:[#allocation5 + $0x38] sm:$0xff]
      %v1582 = vsel %vm1496, %v1544, -inf
      %1583 = vmax.xlane.f32.xlu0 %v1582
      %v1584 = vpop.xlane.xlu0 %1583
      %v1585 = vsel %vm1496, %v1547, -inf
      %1586 = vmax.xlane.f32.xlu0 %v1585
      %v1587 = vpop.xlane.xlu0 %1586
      %v1588 = vsel %vm1496, %v1552, -inf
      %1589 = vmax.xlane.f32.xlu0 %v1588
      %v1590 = vpop.xlane.xlu0 %1589
      %v1591 = vsel %vm1496, %v1555, -inf
      %1592 = vmax.xlane.f32.xlu0 %v1591
      %v1593 = vpop.xlane.xlu0 %1592
      %v1594 = vsel %vm1496, %v1560, -inf
      %1595 = vmax.xlane.f32.xlu0 %v1594
      %v1596 = vpop.xlane.xlu0 %1595
      %v1597 = vsel %vm1496, %v1563, -inf
      %1598 = vmax.xlane.f32.xlu0 %v1597
      %v1599 = vpop.xlane.xlu0 %1598
      %v1600 = vsel %vm1496, %v1568, -inf
      %1601 = vmax.xlane.f32.xlu0 %v1600
      %v1602 = vpop.xlane.xlu0 %1601
      %v1603 = vsel %vm1496, %v1571, -inf
      %1604 = vmax.xlane.f32.xlu0 %v1603
      %v1605 = vpop.xlane.xlu0 %1604
      %v1606 = vmax.f32 %v1574, %v1584
      %v1607 = vmax.f32 %v1575, %v1587
      %v1608 = vmax.f32 %v1576, %v1590
      %v1609 = vmax.f32 %v1577, %v1593
      %v1610 = vmax.f32 %v1578, %v1596
      %v1611 = vmax.f32 %v1579, %v1599
      %v1612 = vmax.f32 %v1580, %v1602
      %v1613 = vmax.f32 %v1581, %v1605
      %v1614 = vsub.f32 %v1574, %v1606
      %v1615 = vsub.f32 %v1575, %v1607
      %v1616 = vsub.f32 %v1576, %v1608
      %v1617 = vsub.f32 %v1577, %v1609
      %v1618 = vsub.f32 %v1578, %v1610
      %v1619 = vsub.f32 %v1579, %v1611
      %v1620 = vsub.f32 %v1580, %v1612
      %v1621 = vsub.f32 %v1581, %v1613
      %v1622 = vmul.f32 %v1614, 1.442695
      %v1623 = vpow.pop %v1622
      %v1624 = vmul.f32 %v1615, 1.442695
      %v1625 = vpow.pop %v1624
      %v1626 = vmul.f32 %v1616, 1.442695
      %v1627 = vpow.pop %v1626
      %v1628 = vmul.f32 %v1617, 1.442695
      %v1629 = vpow.pop %v1628
      %v1630 = vmul.f32 %v1618, 1.442695
      %v1631 = vpow.pop %v1630
      %v1632 = vmul.f32 %v1619, 1.442695
      %v1633 = vpow.pop %v1632
      %v1634 = vmul.f32 %v1620, 1.442695
      %v1635 = vpow.pop %v1634
      %v1636 = vmul.f32 %v1621, 1.442695
      %v1637 = vpow.pop %v1636
      %1639 = vset.pattern.permute.xlu0 0
      %1640 = vperm.xlu0 %1639, %v1606
      %v1641 = vpop.permute.xlu0 %1640
      %1644 = vset.pattern.permute.xlu0 0
      %1645 = vperm.xlu0 %1644, %v1607
      %v1646 = vpop.permute.xlu0 %1645
      %1649 = vset.pattern.permute.xlu0 0
      %1650 = vperm.xlu0 %1649, %v1608
      %v1651 = vpop.permute.xlu0 %1650
      %1654 = vset.pattern.permute.xlu0 0
      %1655 = vperm.xlu0 %1654, %v1609
      %v1656 = vpop.permute.xlu0 %1655
      %1659 = vset.pattern.permute.xlu0 0
      %1660 = vperm.xlu0 %1659, %v1610
      %v1661 = vpop.permute.xlu0 %1660
      %1664 = vset.pattern.permute.xlu0 0
      %1665 = vperm.xlu0 %1664, %v1611
      %v1666 = vpop.permute.xlu0 %1665
      %1669 = vset.pattern.permute.xlu0 0
      %1670 = vperm.xlu0 %1669, %v1612
      %v1671 = vpop.permute.xlu0 %1670
      %1674 = vset.pattern.permute.xlu0 0
      %1675 = vperm.xlu0 %1674, %v1613
      %v1676 = vpop.permute.xlu0 %1675
      %v1678 = vsub.f32 %v1544, %v1641
      %v1679 = vsub.f32 %v1547, %v1646
      %v1680 = vsub.f32 %v1552, %v1651
      %v1681 = vsub.f32 %v1555, %v1656
      %v1682 = vsub.f32 %v1560, %v1661
      %v1683 = vsub.f32 %v1563, %v1666
      %v1684 = vsub.f32 %v1568, %v1671
      %v1685 = vsub.f32 %v1571, %v1676
      %v1686 = vmul.f32 %v1678, 1.442695
      %v1687 = vpow.pop %v1686
      %v1688 = vmul.f32 %v1679, 1.442695
      %v1689 = vpow.pop %v1688
      %v1690 = vmul.f32 %v1680, 1.442695
      %v1691 = vpow.pop %v1690
      %v1692 = vmul.f32 %v1681, 1.442695
      %v1693 = vpow.pop %v1692
      %v1694 = vmul.f32 %v1682, 1.442695
      %v1695 = vpow.pop %v1694
      %v1696 = vmul.f32 %v1683, 1.442695
      %v1697 = vpow.pop %v1696
      %v1698 = vmul.f32 %v1684, 1.442695
      %v1699 = vpow.pop %v1698
      %v1700 = vmul.f32 %v1685, 1.442695
      %v1701 = vpow.pop %v1700
      %v1702 = vld [vmem:[#allocation6] sm:$0xff]
      %v1703 = vld [vmem:[#allocation6 + $0x8] sm:$0xff]
      %v1704 = vld [vmem:[#allocation6 + $0x10] sm:$0xff]
      %v1705 = vld [vmem:[#allocation6 + $0x18] sm:$0xff]
      %v1706 = vld [vmem:[#allocation6 + $0x20] sm:$0xff]
      %v1707 = vld [vmem:[#allocation6 + $0x28] sm:$0xff]
      %v1708 = vld [vmem:[#allocation6 + $0x30] sm:$0xff]
      %v1709 = vld [vmem:[#allocation6 + $0x38] sm:$0xff]
      %v1710 = vmul.f32 %v1623, %v1702
      %v1711 = vmul.f32 %v1625, %v1703
      %v1712 = vmul.f32 %v1627, %v1704
      %v1713 = vmul.f32 %v1629, %v1705
      %v1714 = vmul.f32 %v1631, %v1706
      %v1715 = vmul.f32 %v1633, %v1707
      %v1716 = vmul.f32 %v1635, %v1708
      %v1717 = vmul.f32 %v1637, %v1709
      %v1718 = vsel %vm1496, %v1687, 0.0
      %1719 = vadd.xlane.f32.xlu0 %v1718
      %v1720 = vpop.xlane.xlu0 %1719
      %v1721 = vsel %vm1496, %v1689, 0.0
      %1722 = vadd.xlane.f32.xlu0 %v1721
      %v1723 = vpop.xlane.xlu0 %1722
      %v1724 = vsel %vm1496, %v1691, 0.0
      %1725 = vadd.xlane.f32.xlu0 %v1724
      %v1726 = vpop.xlane.xlu0 %1725
      %v1727 = vsel %vm1496, %v1693, 0.0
      %1728 = vadd.xlane.f32.xlu0 %v1727
      %v1729 = vpop.xlane.xlu0 %1728
      %v1730 = vsel %vm1496, %v1695, 0.0
      %1731 = vadd.xlane.f32.xlu0 %v1730
      %v1732 = vpop.xlane.xlu0 %1731
      %v1733 = vsel %vm1496, %v1697, 0.0
      %1734 = vadd.xlane.f32.xlu0 %v1733
      %v1735 = vpop.xlane.xlu0 %1734
      %v1736 = vsel %vm1496, %v1699, 0.0
      %1737 = vadd.xlane.f32.xlu0 %v1736
      %v1738 = vpop.xlane.xlu0 %1737
      %v1739 = vsel %vm1496, %v1701, 0.0
      %1740 = vadd.xlane.f32.xlu0 %v1739
      %v1741 = vpop.xlane.xlu0 %1740
      %v1742 = vadd.f32 %v1710, %v1720
      %v1743 = vadd.f32 %v1711, %v1723
      %v1744 = vadd.f32 %v1712, %v1726
      %v1745 = vadd.f32 %v1713, %v1729
      %v1746 = vadd.f32 %v1714, %v1732
      %v1747 = vadd.f32 %v1715, %v1735
      %v1748 = vadd.f32 %v1716, %v1738
      %v1749 = vadd.f32 %v1717, %v1741
      %vm1750 = vcmask 7168
      %1751 = vst.msk [vmem:[#allocation6] sm:$0xff] %vm1750, %v1742
      %1752 = vst.msk [vmem:[#allocation6 + $0x8] sm:$0xff] %vm1750, %v1743
      %1753 = vst.msk [vmem:[#allocation6 + $0x10] sm:$0xff] %vm1750, %v1744
      %1754 = vst.msk [vmem:[#allocation6 + $0x18] sm:$0xff] %vm1750, %v1745
      %1755 = vst.msk [vmem:[#allocation6 + $0x20] sm:$0xff] %vm1750, %v1746
      %1756 = vst.msk [vmem:[#allocation6 + $0x28] sm:$0xff] %vm1750, %v1747
      %1757 = vst.msk [vmem:[#allocation6 + $0x30] sm:$0xff] %vm1750, %v1748
      %1758 = vst.msk [vmem:[#allocation6 + $0x38] sm:$0xff] %vm1750, %v1749
      %v1759 = vld [vmem:[#allocation7] sm:$0xff]
      %v1760 = vld [vmem:[#allocation7 + $0x8] sm:$0xff]
      %v1761 = vld [vmem:[#allocation7 + $0x10] sm:$0xff]
      %v1762 = vld [vmem:[#allocation7 + $0x18] sm:$0xff]
      %v1763 = vld [vmem:[#allocation7 + $0x20] sm:$0xff]
      %v1764 = vld [vmem:[#allocation7 + $0x28] sm:$0xff]
      %v1765 = vld [vmem:[#allocation7 + $0x30] sm:$0xff]
      %v1766 = vld [vmem:[#allocation7 + $0x38] sm:$0xff]
      %1768 = vset.pattern.permute.xlu0 0
      %1769 = vperm.xlu0 %1768, %v1623
      %v1770 = vpop.permute.xlu0 %1769
      %1773 = vset.pattern.permute.xlu0 0
      %1774 = vperm.xlu0 %1773, %v1625
      %v1775 = vpop.permute.xlu0 %1774
      %1778 = vset.pattern.permute.xlu0 0
      %1779 = vperm.xlu0 %1778, %v1627
      %v1780 = vpop.permute.xlu0 %1779
      %1783 = vset.pattern.permute.xlu0 0
      %1784 = vperm.xlu0 %1783, %v1629
      %v1785 = vpop.permute.xlu0 %1784
      %1788 = vset.pattern.permute.xlu0 0
      %1789 = vperm.xlu0 %1788, %v1631
      %v1790 = vpop.permute.xlu0 %1789
      %1793 = vset.pattern.permute.xlu0 0
      %1794 = vperm.xlu0 %1793, %v1633
      %v1795 = vpop.permute.xlu0 %1794
      %1798 = vset.pattern.permute.xlu0 0
      %1799 = vperm.xlu0 %1798, %v1635
      %v1800 = vpop.permute.xlu0 %1799
      %1803 = vset.pattern.permute.xlu0 0
      %1804 = vperm.xlu0 %1803, %v1637
      %v1805 = vpop.permute.xlu0 %1804
      %v1807 = vmul.f32 %v1770, %v1759
      %v1808 = vmul.f32 %v1775, %v1760
      %v1809 = vmul.f32 %v1780, %v1761
      %v1810 = vmul.f32 %v1785, %v1762
      %v1811 = vmul.f32 %v1790, %v1763
      %v1812 = vmul.f32 %v1795, %v1764
      %v1813 = vmul.f32 %v1800, %v1765
      %v1814 = vmul.f32 %v1805, %v1766
      %v1815 = vpack.c.bf16 %v1689, %v1687
      %v1816 = vpack.c.bf16 %v1693, %v1691
      %v1817 = vpack.c.bf16 %v1697, %v1695
      %v1818 = vpack.c.bf16 %v1701, %v1699
      %v1827 = vunpack.c.l.b16 %v1436
      %v1828 = vunpack.c.l.b16 %v1437
      %v1829 = vunpack.c.l.b16 %v1438
      %v1830 = vunpack.c.l.b16 %v1439
      %v1831 = vunpack.c.l.b16 %v1440
      %v1832 = vunpack.c.l.b16 %v1441
      %v1833 = vunpack.c.l.b16 %v1442
      %v1834 = vunpack.c.l.b16 %v1443
      %v1835 = vpack.c.b16 %v1828, %v1827
      %v1836 = vpack.c.b16 %v1830, %v1829
      %v1837 = vpack.c.b16 %v1832, %v1831
      %v1838 = vpack.c.b16 %v1834, %v1833
      %v1840 = vsel %vm1496, %v1815, 0
      %v1843 = vsel %vm1496, %v1816, 0
      %v1846 = vsel %vm1496, %v1817, 0
      %v1849 = vsel %vm1496, %v1818, 0
      %v1852 = vsel %vm1496, %v1835, 0
      %v1855 = vsel %vm1496, %v1836, 0
      %v1858 = vsel %vm1496, %v1837, 0
      %v1861 = vsel %vm1496, %v1838, 0
      %1863 = vmatprep.subr.bf16.mxu0 0
      %1864 = vmatpush1.bf16.xpose.msra.mxu0 0
      %1865 = vmatprep.subr.bf16.mxu0 0
      %1866 = vmatpush1.bf16.xpose.msra.mxu0 0
      %1867 = vmatprep.subr.bf16.mxu0 0
      %1868 = vmatpush1.bf16.xpose.msra.mxu0 0
      %1869 = vmatprep.subr.bf16.mxu0 0
      %1870 = vmatpush1.bf16.xpose.msra.mxu0 0
      %1871 = vmatprep.subr.bf16.mxu0 0
      %1872 = vmatpush1.bf16.xpose.msra.mxu0 %v1861
      %1873 = vmatprep.subr.bf16.mxu0 0
      %1874 = vmatpush1.bf16.xpose.msra.mxu0 %v1858
      %1875 = vmatprep.subr.bf16.mxu0 0
      %1876 = vmatpush1.bf16.xpose.msra.mxu0 %v1855
      %1877 = vmatprep.subr.bf16.mxu0 0
      %1878 = vmatpush1.bf16.xpose.msra.mxu0 %v1852
      %1879 = vmatprep.subr.bf16.mxu0 0
      %1880 = vmatpush2.bf16.xpose.msra.mxu0 0
      %1881 = vmatprep.subr.bf16.mxu0 0
      %1882 = vmatpush2.bf16.xpose.msra.mxu0 0
      %1883 = vmatprep.subr.bf16.mxu0 0
      %1884 = vmatpush2.bf16.xpose.msra.mxu0 0
      %1885 = vmatprep.subr.bf16.mxu0 0
      %1886 = vmatpush2.bf16.xpose.msra.mxu0 0
      %1887 = vmatprep.subr.bf16.mxu0 0
      %1888 = vmatpush2.bf16.xpose.msra.mxu0 0
      %1889 = vmatprep.subr.bf16.mxu0 0
      %1890 = vmatpush2.bf16.xpose.msra.mxu0 0
      %1891 = vmatprep.subr.bf16.mxu0 0
      %1892 = vmatpush2.bf16.xpose.msra.mxu0 0
      %1893 = vmatprep.subr.bf16.mxu0 0
      %1894 = vmatpush2.bf16.xpose.msra.mxu0 0
      %1895 = vmatprep.mubr.bf16.mxu0 0
      %1896 = vmatmul.mubr.bf16.gmra.mxu0 %v1840
      %v1897 = vpop.f32.mrf.mxu0
      %v1898 = vadd.f32 0.0, %v1897
      %v1899 = vpop.f32.mrf.mxu0
      %v1900 = vpop.f32.mrf.mxu0
      %v1901 = vadd.f32 0.0, %v1900
      %v1902 = vpop.f32.mrf.mxu0
      %1903 = vmatprep.mubr.bf16.mxu0 0
      %1904 = vmatmul.mubr.bf16.gmra.mxu0 %v1843
      %v1905 = vpop.f32.mrf.mxu0
      %v1906 = vadd.f32 0.0, %v1905
      %v1907 = vpop.f32.mrf.mxu0
      %v1908 = vpop.f32.mrf.mxu0
      %v1909 = vadd.f32 0.0, %v1908
      %v1910 = vpop.f32.mrf.mxu0
      %1911 = vmatprep.mubr.bf16.mxu0 0
      %1912 = vmatmul.mubr.bf16.gmra.mxu0 %v1846
      %v1913 = vpop.f32.mrf.mxu0
      %v1914 = vadd.f32 0.0, %v1913
      %v1915 = vpop.f32.mrf.mxu0
      %v1916 = vpop.f32.mrf.mxu0
      %v1917 = vadd.f32 0.0, %v1916
      %v1918 = vpop.f32.mrf.mxu0
      %1919 = vmatprep.mubr.bf16.mxu0 0
      %1920 = vmatmul.mubr.bf16.gmra.mxu0 %v1849
      %v1921 = vpop.f32.mrf.mxu0
      %v1922 = vadd.f32 0.0, %v1921
      %v1923 = vpop.f32.mrf.mxu0
      %v1924 = vpop.f32.mrf.mxu0
      %v1925 = vadd.f32 0.0, %v1924
      %v1926 = vpop.f32.mrf.mxu0
      %1927 = vdwg.mxu0
      %v1928 = vadd.f32 %v1807, %v1898
      %v1929 = vadd.f32 %v1808, %v1901
      %v1930 = vadd.f32 %v1809, %v1906
      %v1931 = vadd.f32 %v1810, %v1909
      %v1932 = vadd.f32 %v1811, %v1914
      %v1933 = vadd.f32 %v1812, %v1917
      %v1934 = vadd.f32 %v1813, %v1922
      %v1935 = vadd.f32 %v1814, %v1925
      %1936 = vst.msk [vmem:[#allocation7] sm:$0xff] %vm1496, %v1928
      %1937 = vst.msk [vmem:[#allocation7 + $0x8] sm:$0xff] %vm1496, %v1929
      %1938 = vst.msk [vmem:[#allocation7 + $0x10] sm:$0xff] %vm1496, %v1930
      %1939 = vst.msk [vmem:[#allocation7 + $0x18] sm:$0xff] %vm1496, %v1931
      %1940 = vst.msk [vmem:[#allocation7 + $0x20] sm:$0xff] %vm1496, %v1932
      %1941 = vst.msk [vmem:[#allocation7 + $0x28] sm:$0xff] %vm1496, %v1933
      %1942 = vst.msk [vmem:[#allocation7 + $0x30] sm:$0xff] %vm1496, %v1934
      %1943 = vst.msk [vmem:[#allocation7 + $0x38] sm:$0xff] %vm1496, %v1935
      %1944 = vst.msk [vmem:[#allocation5] sm:$0xff] %vm1750, %v1606
      %1945 = vst.msk [vmem:[#allocation5 + $0x8] sm:$0xff] %vm1750, %v1607
      %1946 = vst.msk [vmem:[#allocation5 + $0x10] sm:$0xff] %vm1750, %v1608
      %1947 = vst.msk [vmem:[#allocation5 + $0x18] sm:$0xff] %vm1750, %v1609
      %1948 = vst.msk [vmem:[#allocation5 + $0x20] sm:$0xff] %vm1750, %v1610
      %1949 = vst.msk [vmem:[#allocation5 + $0x28] sm:$0xff] %vm1750, %v1611
      %1950 = vst.msk [vmem:[#allocation5 + $0x30] sm:$0xff] %vm1750, %v1612
      %1951 = vst.msk [vmem:[#allocation5 + $0x38] sm:$0xff] %vm1750, %v1613
      // Predicated region
      $region77: #{vae_attention_block.3} parent=67 // pred_check
        %p1952 = pneg %p1059
      $region78: #{vae_attention_block.3} parent=67 // pred_check_branch
        %1954 = sbr.rel (%p1952) target = $region80
      $region79: #{vae_attention_block.3} parent=67 // pred_region
        %v1955 = vld [vmem:[#allocation6] sm:$0xff]
        %v1956 = vld [vmem:[#allocation6 + $0x8] sm:$0xff]
        %v1957 = vld [vmem:[#allocation6 + $0x10] sm:$0xff]
        %v1958 = vld [vmem:[#allocation6 + $0x18] sm:$0xff]
        %v1959 = vld [vmem:[#allocation6 + $0x20] sm:$0xff]
        %v1960 = vld [vmem:[#allocation6 + $0x28] sm:$0xff]
        %v1961 = vld [vmem:[#allocation6 + $0x30] sm:$0xff]
        %v1962 = vld [vmem:[#allocation6 + $0x38] sm:$0xff]
        %v1963 = vrcp.pop %v1955
        %v1964 = vrcp.pop %v1956
        %v1965 = vrcp.pop %v1957
        %v1966 = vrcp.pop %v1958
        %v1967 = vrcp.pop %v1959
        %v1968 = vrcp.pop %v1960
        %v1969 = vrcp.pop %v1961
        %v1970 = vrcp.pop %v1962
        %v1971 = vld [vmem:[#allocation7] sm:$0xff]
        %v1972 = vld [vmem:[#allocation7 + $0x8] sm:$0xff]
        %v1973 = vld [vmem:[#allocation7 + $0x10] sm:$0xff]
        %v1974 = vld [vmem:[#allocation7 + $0x18] sm:$0xff]
        %v1975 = vld [vmem:[#allocation7 + $0x20] sm:$0xff]
        %v1976 = vld [vmem:[#allocation7 + $0x28] sm:$0xff]
        %v1977 = vld [vmem:[#allocation7 + $0x30] sm:$0xff]
        %v1978 = vld [vmem:[#allocation7 + $0x38] sm:$0xff]
        %1980 = vset.pattern.permute.xlu0 0
        %1981 = vperm.xlu0 %1980, %v1963
        %v1982 = vpop.permute.xlu0 %1981
        %1985 = vset.pattern.permute.xlu0 0
        %1986 = vperm.xlu0 %1985, %v1964
        %v1987 = vpop.permute.xlu0 %1986
        %1990 = vset.pattern.permute.xlu0 0
        %1991 = vperm.xlu0 %1990, %v1965
        %v1992 = vpop.permute.xlu0 %1991
        %1995 = vset.pattern.permute.xlu0 0
        %1996 = vperm.xlu0 %1995, %v1966
        %v1997 = vpop.permute.xlu0 %1996
        %2000 = vset.pattern.permute.xlu0 0
        %2001 = vperm.xlu0 %2000, %v1967
        %v2002 = vpop.permute.xlu0 %2001
        %2005 = vset.pattern.permute.xlu0 0
        %2006 = vperm.xlu0 %2005, %v1968
        %v2007 = vpop.permute.xlu0 %2006
        %2010 = vset.pattern.permute.xlu0 0
        %2011 = vperm.xlu0 %2010, %v1969
        %v2012 = vpop.permute.xlu0 %2011
        %2015 = vset.pattern.permute.xlu0 0
        %2016 = vperm.xlu0 %2015, %v1970
        %v2017 = vpop.permute.xlu0 %2016
        %v2019 = vmul.f32 %v1971, %v1982
        %v2020 = vmul.f32 %v1972, %v1987
        %v2021 = vmul.f32 %v1973, %v1992
        %v2022 = vmul.f32 %v1974, %v1997
        %v2023 = vmul.f32 %v1975, %v2002
        %v2024 = vmul.f32 %v1976, %v2007
        %v2025 = vmul.f32 %v1977, %v2012
        %v2026 = vmul.f32 %v1978, %v2017
        %v2027 = vpack.c.bf16 %v2020, %v2019
        %v2028 = vpack.c.bf16 %v2022, %v2021
        %v2029 = vpack.c.bf16 %v2024, %v2023
        %v2030 = vpack.c.bf16 %v2026, %v2025
        %v2031 = vld [vmem:[%s10] sm:$0xf]
        %v2032 = vld [vmem:[%s10 + $0x4] sm:$0xf]
        %v2033 = vld [vmem:[%s10 + $0x8] sm:$0xf]
        %v2034 = vld [vmem:[%s10 + $0xc] sm:$0xf]
        %v2035 = vld [vmem:[%s10 + $0x10] sm:$0xf]
        %v2036 = vld [vmem:[%s10 + $0x14] sm:$0xf]
        %v2037 = vld [vmem:[%s10 + $0x18] sm:$0xf]
        %v2038 = vld [vmem:[%s10 + $0x1c] sm:$0xf]
        %v2039 = vld [vmem:[%s11] sm:$0xff]
        %v2040 = vld [vmem:[%s11 + $0x8] sm:$0xff]
        %v2041 = vld [vmem:[%s11 + $0x10] sm:$0xff]
        %v2042 = vld [vmem:[%s11 + $0x18] sm:$0xff]
        %v2043 = vld [vmem:[%s11 + $0x20] sm:$0xff]
        %v2044 = vld [vmem:[%s11 + $0x28] sm:$0xff]
        %v2045 = vld [vmem:[%s11 + $0x30] sm:$0xff]
        %v2046 = vld [vmem:[%s11 + $0x38] sm:$0xff]
        %2048 = vset.pattern.permute.xlu0 0
        %2049 = vperm.xlu0 %2048, %v2039
        %v2050 = vpop.permute.xlu0 %2049
        %2053 = vset.pattern.permute.xlu0 0
        %2054 = vperm.xlu0 %2053, %v2040
        %v2055 = vpop.permute.xlu0 %2054
        %2058 = vset.pattern.permute.xlu0 0
        %2059 = vperm.xlu0 %2058, %v2041
        %v2060 = vpop.permute.xlu0 %2059
        %2063 = vset.pattern.permute.xlu0 0
        %2064 = vperm.xlu0 %2063, %v2042
        %v2065 = vpop.permute.xlu0 %2064
        %2068 = vset.pattern.permute.xlu0 0
        %2069 = vperm.xlu0 %2068, %v2043
        %v2070 = vpop.permute.xlu0 %2069
        %2073 = vset.pattern.permute.xlu0 0
        %2074 = vperm.xlu0 %2073, %v2044
        %v2075 = vpop.permute.xlu0 %2074
        %2078 = vset.pattern.permute.xlu0 0
        %2079 = vperm.xlu0 %2078, %v2045
        %v2080 = vpop.permute.xlu0 %2079
        %2083 = vset.pattern.permute.xlu0 0
        %2084 = vperm.xlu0 %2083, %v2046
        %v2085 = vpop.permute.xlu0 %2084
        %v2095 = vunpack.c.l.b16 %v2031
        %v2096 = vunpack.c.l.b16 %v2032
        %v2097 = vunpack.c.l.b16 %v2033
        %v2098 = vunpack.c.l.b16 %v2034
        %v2099 = vunpack.c.l.b16 %v2035
        %v2100 = vunpack.c.l.b16 %v2036
        %v2101 = vunpack.c.l.b16 %v2037
        %v2102 = vunpack.c.l.b16 %v2038
        %v2103 = vpack.c.b16 %v2096, %v2095
        %v2104 = vpack.c.b16 %v2098, %v2097
        %v2105 = vpack.c.b16 %v2100, %v2099
        %v2106 = vpack.c.b16 %v2102, %v2101
        %v2108 = vsel %vm1496, %v2103, 0
        %v2111 = vsel %vm1496, %v2104, 0
        %v2114 = vsel %vm1496, %v2105, 0
        %v2117 = vsel %vm1496, %v2106, 0
        %v2120 = vsel %vm1496, %v2027, 0
        %v2123 = vsel %vm1496, %v2028, 0
        %v2126 = vsel %vm1496, %v2029, 0
        %v2129 = vsel %vm1496, %v2030, 0
        %2131 = vmatprep.subr.bf16.mxu0 0
        %2132 = vmatpush1.bf16.xpose.msra.mxu0 0
        %2133 = vmatprep.subr.bf16.mxu0 0
        %2134 = vmatpush1.bf16.xpose.msra.mxu0 0
        %2135 = vmatprep.subr.bf16.mxu0 0
        %2136 = vmatpush1.bf16.xpose.msra.mxu0 0
        %2137 = vmatprep.subr.bf16.mxu0 0
        %2138 = vmatpush1.bf16.xpose.msra.mxu0 0
        %2139 = vmatprep.subr.bf16.mxu0 0
        %2140 = vmatpush1.bf16.xpose.msra.mxu0 %v2129
        %2141 = vmatprep.subr.bf16.mxu0 0
        %2142 = vmatpush1.bf16.xpose.msra.mxu0 %v2126
        %2143 = vmatprep.subr.bf16.mxu0 0
        %2144 = vmatpush1.bf16.xpose.msra.mxu0 %v2123
        %2145 = vmatprep.subr.bf16.mxu0 0
        %2146 = vmatpush1.bf16.xpose.msra.mxu0 %v2120
        %2147 = vmatprep.subr.bf16.mxu0 0
        %2148 = vmatpush2.bf16.xpose.msra.mxu0 0
        %2149 = vmatprep.subr.bf16.mxu0 0
        %2150 = vmatpush2.bf16.xpose.msra.mxu0 0
        %2151 = vmatprep.subr.bf16.mxu0 0
        %2152 = vmatpush2.bf16.xpose.msra.mxu0 0
        %2153 = vmatprep.subr.bf16.mxu0 0
        %2154 = vmatpush2.bf16.xpose.msra.mxu0 0
        %2155 = vmatprep.subr.bf16.mxu0 0
        %2156 = vmatpush2.bf16.xpose.msra.mxu0 0
        %2157 = vmatprep.subr.bf16.mxu0 0
        %2158 = vmatpush2.bf16.xpose.msra.mxu0 0
        %2159 = vmatprep.subr.bf16.mxu0 0
        %2160 = vmatpush2.bf16.xpose.msra.mxu0 0
        %2161 = vmatprep.subr.bf16.mxu0 0
        %2162 = vmatpush2.bf16.xpose.msra.mxu0 0
        %2163 = vmatprep.mubr.bf16.mxu0 0
        %2164 = vmatmul.mubr.bf16.gmra.mxu0 %v2108
        %v2165 = vpop.f32.mrf.mxu0
        %v2166 = vadd.f32 %v2050, %v2165
        %v2167 = vpop.f32.mrf.mxu0
        %v2168 = vpop.f32.mrf.mxu0
        %v2169 = vadd.f32 %v2055, %v2168
        %v2170 = vpop.f32.mrf.mxu0
        %2171 = vmatprep.mubr.bf16.mxu0 0
        %2172 = vmatmul.mubr.bf16.gmra.mxu0 %v2111
        %v2173 = vpop.f32.mrf.mxu0
        %v2174 = vadd.f32 %v2060, %v2173
        %v2175 = vpop.f32.mrf.mxu0
        %v2176 = vpop.f32.mrf.mxu0
        %v2177 = vadd.f32 %v2065, %v2176
        %v2178 = vpop.f32.mrf.mxu0
        %2179 = vmatprep.mubr.bf16.mxu0 0
        %2180 = vmatmul.mubr.bf16.gmra.mxu0 %v2114
        %v2181 = vpop.f32.mrf.mxu0
        %v2182 = vadd.f32 %v2070, %v2181
        %v2183 = vpop.f32.mrf.mxu0
        %v2184 = vpop.f32.mrf.mxu0
        %v2185 = vadd.f32 %v2075, %v2184
        %v2186 = vpop.f32.mrf.mxu0
        %2187 = vmatprep.mubr.bf16.mxu0 0
        %2188 = vmatmul.mubr.bf16.gmra.mxu0 %v2117
        %v2189 = vpop.f32.mrf.mxu0
        %v2190 = vadd.f32 %v2080, %v2189
        %v2191 = vpop.f32.mrf.mxu0
        %v2192 = vpop.f32.mrf.mxu0
        %v2193 = vadd.f32 %v2085, %v2192
        %v2194 = vpop.f32.mrf.mxu0
        %2195 = vdwg.mxu0
        %v2196 = vld [vmem:[%s506] sm:$0xff]
        %v2197 = vld [vmem:[%s506 + $0x8] sm:$0xff]
        %v2198 = vld [vmem:[%s506 + $0x10] sm:$0xff]
        %v2199 = vld [vmem:[%s506 + $0x18] sm:$0xff]
        %v2200 = vld [vmem:[%s506 + $0x20] sm:$0xff]
        %v2201 = vld [vmem:[%s506 + $0x28] sm:$0xff]
        %v2202 = vld [vmem:[%s506 + $0x30] sm:$0xff]
        %v2203 = vld [vmem:[%s506 + $0x38] sm:$0xff]
        %v2204 = vadd.f32 %v2166, %v2196
        %v2205 = vadd.f32 %v2169, %v2197
        %v2206 = vadd.f32 %v2174, %v2198
        %v2207 = vadd.f32 %v2177, %v2199
        %v2208 = vadd.f32 %v2182, %v2200
        %v2209 = vadd.f32 %v2185, %v2201
        %v2210 = vadd.f32 %v2190, %v2202
        %v2211 = vadd.f32 %v2193, %v2203
        %2212 = vst.msk [vmem:[%s536] sm:$0xff] %vm1496, %v2204
        %2213 = vst.msk [vmem:[%s536 + $0x8] sm:$0xff] %vm1496, %v2205
        %2214 = vst.msk [vmem:[%s536 + $0x10] sm:$0xff] %vm1496, %v2206
        %2215 = vst.msk [vmem:[%s536 + $0x18] sm:$0xff] %vm1496, %v2207
        %2216 = vst.msk [vmem:[%s536 + $0x20] sm:$0xff] %vm1496, %v2208
        %2217 = vst.msk [vmem:[%s536 + $0x28] sm:$0xff] %vm1496, %v2209
        %2218 = vst.msk [vmem:[%s536 + $0x30] sm:$0xff] %vm1496, %v2210
        %2219 = vst.msk [vmem:[%s536 + $0x38] sm:$0xff] %vm1496, %v2211
      $region80: #{vae_attention_block.3} parent=67 // pred_fallthru
        _
      %p2220 = scmp.lt.s32.totalorder %s28, 1
      %s2221 = scalar_select %p2220, %s28, 1
      %p2222 = scmp.lt.s32.totalorder %s29, 0
      %s2223 = scalar_select %p2222, %s29, 0
      %s2224 = smul.addr %s2221, 8
      %s2225 = sadd.s32 %s2223, %s2224
      %s2226 = smul.addr %s2225, 8
      %s2227 = scalar_lea.vmem %s12, %s2226
      // Predicated region
      $region81: #{vae_attention_block.3} parent=67 // pred_check
        %p2228 = pneg %p342
      $region82: #{vae_attention_block.3} parent=67 // pred_check_branch
        %2230 = sbr.rel (%p2228) target = $region84
      $region83: #{vae_attention_block.3} parent=67 // pred_region
        _
      $region84: #{vae_attention_block.3} parent=67 // pred_fallthru
        _
    $region68: #{vae_attention_block.3} parent=5 // pred_fallthru
      _
    %p2231 = scmp.le.s32.totalorder 2, %s18
    // Predicated region
    $region85: #{vae_attention_block.3} parent=5 // pred_check
      %p2232 = pneg %p2231
    $region86: #{vae_attention_block.3} parent=5 // pred_check_branch
      %2234 = sbr.rel (%p2232) target = $region88
    $region87: #{vae_attention_block.3} parent=5 // pred_region
      %s2235 = ssub.s32 %s18, 2
      // Predicated region
      $region89: #{vae_attention_block.3} parent=87 // pred_check
        %p2236 = pneg %p348
      $region90: #{vae_attention_block.3} parent=87 // pred_check_branch
        %2238 = sbr.rel (%p2236) target = $region92
      $region91: #{vae_attention_block.3} parent=87 // pred_region
        %p2239 = scmp.lt.s32.totalorder %s31, 1
        %s2240 = scalar_select %p2239, %s31, 1
        %p2241 = scmp.lt.s32.totalorder %s32, 0
        %s2242 = scalar_select %p2241, %s32, 0
        %s2243 = smul.addr %s2240, 8
        %s2244 = sadd.s32 %s2242, %s2243
        %s2245 = smul.addr %s2244, 8
        %s2246 = scalar_lea.vmem %s12, %s2245
      $region92: #{vae_attention_block.3} parent=87 // pred_fallthru
        _
    $region88: #{vae_attention_block.3} parent=5 // pred_fallthru
      _
  $region6: #{vae_attention_block.3} parent=0 // loop_footer
    %s22 = sadd.s32 1, %s18
  $region7: #{vae_attention_block.3} parent=0 // loop_footer_branch
    %17 = sbr.rel target = $region3
  $region8: #{vae_attention_block.3} parent=0 // loop_exit
    _

</llo_original>
